<compile_context>
chip_gen: v7x
topology: tpu7x:2x2x1
jax: 0.10.0
libtpu: 0.0.40
codegen_flags: <defaults>
</compile_context>

<pallas_src>
import numpy as np
import jax
import jax.numpy as jnp
from jax.experimental import pallas as pl
from jax.experimental.pallas import tpu as pltpu

FEATURE_DIM = 128      # stand-in for backbone.feature_info[-1]['num_chs']
NUM_CLASSES = 7
SE_RATIO = 16
PATCH = 8              # stand-in backbone downsample factor
POOL_PAD = 8           # 2x2 adaptive pool = 4 cells, padded to 8 for sublane alignment
# Above v5e (16 MiB) / v6e (32 MiB) scoped defaults, below v7x 64 MiB physical.
VMEM_LIMIT_BYTES = 48 * 1024 * 1024


# ----------------------------------------------------------------------------
# Stem kernel: patch-embed matmul + bias + ReLU, M-row-tiled, bf16 in/out
# ----------------------------------------------------------------------------
def _stem_kernel(x_ref, w_ref, b_ref, o_ref):
    y = jnp.dot(x_ref[...], w_ref[...], preferred_element_type=jnp.float32)
    y = jnp.maximum(y + b_ref[...], 0.0)
    o_ref[...] = y.astype(o_ref.dtype)


def stem_matmul(patches, w, b, *, out_dtype=jnp.bfloat16, row_tile=1024):
    M, K = patches.shape
    _, C = w.shape
    tm = M if M <= row_tile else row_tile
    return pl.pallas_call(
        _stem_kernel,
        out_shape=jax.ShapeDtypeStruct((M, C), out_dtype),
        grid=(pl.cdiv(M, tm),),
        in_specs=[
            pl.BlockSpec((tm, K), lambda i: (i, 0)),
            pl.BlockSpec((K, C), lambda i: (0, 0), pipeline_mode=pl.Buffered(1)),
            pl.BlockSpec((1, C), lambda i: (0, 0), pipeline_mode=pl.Buffered(1)),
        ],
        out_specs=pl.BlockSpec((tm, C), lambda i: (i, 0)),
        compiler_params=pltpu.CompilerParams(
            dimension_semantics=("parallel",),
            vmem_limit_bytes=VMEM_LIMIT_BYTES),
    )(patches, w, b.reshape(1, C).astype(jnp.float32))


# ----------------------------------------------------------------------------
# Fully fused head kernel (TB batch elements per grid step)
# ----------------------------------------------------------------------------
def _se_gate(s_f32, w1t, w2, b1, b2):
    """SE gate from a squeezed (TB, C) f32 vector; bf16 MXU operands, f32 math."""
    h = jax.lax.dot_general(s_f32.astype(jnp.bfloat16), w1t,
                            (((1,), (1,)), ((), ())),
                            preferred_element_type=jnp.float32)      # (TB, Ch)
    h = jnp.maximum(h + b1, 0.0)
    g = jnp.dot(h.astype(jnp.bfloat16), w2,
                preferred_element_type=jnp.float32) + b2             # (TB, C)
    return jax.nn.sigmoid(g)


def _head_kernel(feat_ref, pmat_ref, emat_ref, gw_ref,
                 w_qkv_ref, w_misc_ref, se_w1t_ref, se_w2_ref,
                 bias_ref, w_cls_ref, out_ref):
    TB, N, C = feat_ref.shape
    Ch = se_w2_ref.shape[0] // 3
    f32, bf16 = jnp.float32, jnp.bfloat16

    x = feat_ref[...]                                   # (TB, N, C) bf16
    x2 = x.reshape(TB * N, C)

    # ---- PRA: fused qkv projection + single-head token self-attention + residual
    qkv = jnp.dot(x2, w_qkv_ref[...], preferred_element_type=f32)    # (TB*N, 3C)
    q = qkv[:, :C].astype(bf16).reshape(TB, N, C)
    k = qkv[:, C:2 * C].astype(bf16).reshape(TB, N, C)
    v = qkv[:, 2 * C:].astype(bf16).reshape(TB, N, C)
    scale = C ** -0.5
    s = jnp.einsum('bnd,bmd->bnm', q, k, preferred_element_type=f32) * scale
    # TODO(synk): for N >= ~2048 tokens the (N, N) scores should be tiled
    #             flash-style (online softmax over kv blocks) to fit v7x VMEM;
    #             today _choose_tb only gates TB against a VMEM budget.
    s = s - jnp.max(s, axis=-1, keepdims=True)
    p = jnp.exp(s)
    p = p * pl.reciprocal(jnp.sum(p, axis=-1, keepdims=True), approx=True)
    y = jnp.einsum('bnm,bmd->bnd', p.astype(bf16), v, preferred_element_type=f32)
    y = y + x.astype(f32)                               # (TB, N, C) f32

    def gate(sq, idx):
        return _se_gate(sq,
                        se_w1t_ref[idx * Ch:(idx + 1) * Ch, :],
                        se_w2_ref[idx * Ch:(idx + 1) * Ch, :],
                        bias_ref[2 * idx:2 * idx + 1, :Ch],
                        bias_ref[2 * idx + 1:2 * idx + 2, :])

    # ---- SE_Local fused as the PRA epilogue (squeeze == token mean)
    g_loc = gate(jnp.mean(y, axis=1), 0)                # (TB, C)
    pra = (y * g_loc[:, None, :]).astype(bf16)          # (TB, N, C)

    # ---- APP branch at pooled 2x2 resolution (adaptive avg-pool as a matmul)
    pmat_b = jnp.broadcast_to(pmat_ref[...][None], (TB, POOL_PAD, N))
    pooled = jnp.einsum('bpn,bnd->bpd', pmat_b, x, preferred_element_type=f32)
    w_app = w_misc_ref[0]                               # (C, C) bf16
    a = jnp.maximum(
        jnp.einsum('bpd,de->bpe', pooled.astype(bf16), w_app,
                   preferred_element_type=f32) + bias_ref[6:7, :][None],
        0.0)                                            # (TB, 8, C) f32
    # SE_Global squeeze == spatial mean of the *upsampled* map == cell-weighted mean
    sq_glob = jnp.sum(a * gw_ref[...][None], axis=1)    # (TB, C), VPU only
    g_glob = gate(sq_glob, 1)
    app_g = (a * g_glob[:, None, :]).astype(bf16)       # (TB, 8, C)

    # ---- Fusion: concat-free split-weight 1x1 conv (+ folded BN) + ReLU.
    wf_pra = w_misc_ref[1]
    wf_app = w_misc_ref[2]
    app_wf = jnp.einsum('bpd,de->bpe', app_g, wf_app, preferred_element_type=f32)
    # Nearest 2x2 -> (Hf, Wf) upsample as a tiny (N, 8) matmul; never hits HBM.
    # TODO(synk): once MXU-bound, replace with a 4-way VPU select via iota cell masks.
    emat_b = jnp.broadcast_to(emat_ref[...][None], (TB, N, POOL_PAD))
    app_term = jnp.einsum('bnp,bpe->bne', emat_b, app_wf.astype(bf16),
                          preferred_element_type=f32)   # (TB, N, C)
    fused = jnp.dot(pra.reshape(TB * N, C), wf_pra,
                    preferred_element_type=f32).reshape(TB, N, C)
    fused = jnp.maximum(fused + app_term + bias_ref[7:8, :][None], 0.0)

    # ---- SE_Fusion + global average pool + classifier.
    #      mean(fused * g) == mean(fused) * g since g is per-channel.
    m = jnp.mean(fused, axis=1)                         # (TB, C)
    pooled_vec = m * gate(m, 2)
    out = jnp.dot(pooled_vec.astype(bf16), w_cls_ref[...],
                  preferred_element_type=f32) + bias_ref[8:9, :NUM_CLASSES]
    out_ref[0] = out.astype(out_ref.dtype)              # (TB, NUM_CLASSES)


def _choose_tb(B, N, C, budget_bytes=24 * 1024 * 1024):
    """Batch elements per grid step, gated against a per-step VMEM budget
    (f32 (N,N) scores + ~8 live (N,C) f32 temporaries per element), keeping
    >=2 grid steps so both v7x TensorCores stay busy."""
    per_b = 4 * (N * N + 8 * N * C)
    tb = int(max(1, min(B, budget_bytes // max(per_b, 1))))
    while B % tb:
        tb -= 1
    if B // tb < 2 and B >= 2:
        tb = max(1, B // 2)
        while tb > 1 and B % tb:
            tb -= 1
    return max(tb, 1)


def _const_spec(w):
    nd = w.ndim
    # Constant block index across the grid -> single-buffer (no pipelining benefit).
    return pl.BlockSpec(w.shape, lambda g: (0,) * nd, pipeline_mode=pl.Buffered(1))


def fused_head(feat, pmat, emat, gw, packs):
    B, N, C = feat.shape
    TB = _choose_tb(B, N, C)
    G = B // TB

    weights = [pmat, emat, gw,
               packs["w_qkv"], packs["w_misc"],
               packs["se_w1t"], packs["se_w2"],
               packs["bias"], packs["w_cls"]]
    in_specs = [pl.BlockSpec((TB, N, C), lambda g: (g, 0, 0))]
    in_specs += [_const_spec(w) for w in weights]

    w_bytes = sum(int(w.size) * w.dtype.itemsize for w in weights)
    flops = 2 * B * (3 * N * C * C + 2 * N * N * C + N * C * C
                     + 2 * POOL_PAD * C * C + 2 * N * POOL_PAD * C
                     + 6 * C * (C // SE_RATIO) + C * NUM_CLASSES)
    cost = pl.CostEstimate(
        flops=int(flops),
        transcendentals=int(B * (N * N + N + 6 * C)),
        bytes_accessed=int(feat.size * feat.dtype.itemsize + w_bytes
                           + B * NUM_CLASSES * 4),
    )
    out = pl.pallas_call(
        _head_kernel,
        out_shape=jax.ShapeDtypeStruct((G, TB, NUM_CLASSES), jnp.float32),
        grid=(G,),
        in_specs=in_specs,
        out_specs=pl.BlockSpec((1, TB, NUM_CLASSES), lambda g: (g, 0, 0)),
        compiler_params=pltpu.CompilerParams(
            dimension_semantics=("parallel",),
            vmem_limit_bytes=VMEM_LIMIT_BYTES),
        cost_estimate=cost,
    )(feat, *weights)
    return out.reshape(B, NUM_CLASSES)


# ----------------------------------------------------------------------------
# Static APP operators (pool / upsample / global-mean weights)
# ----------------------------------------------------------------------------
def _pool_expand_mats(Hf, Wf, npad=POOL_PAD):
    """pmat (npad, N): adaptive 2x2 avg-pool as a matmul (rows 4..7 zero pad).
    emat (N, npad): nearest 2x2 -> (Hf, Wf) upsample as a matmul.
    gw   (npad,)  : spatial mean of the upsampled map expressed over pooled
                    cells (emat column sums / N), used for the SE_Global squeeze."""
    N = Hf * Wf
    pmat = np.zeros((npad, N), np.float32)
    emat = np.zeros((N, npad), np.float32)

    def bounds(size):
        return [(int(np.floor(r * size / 2.0)), int(np.ceil((r + 1) * size / 2.0)))
                for r in range(2)]

    hb, wb = bounds(Hf), bounds(Wf)
    for ri in range(2):
        for rj in range(2):
            cell = ri * 2 + rj
            (h0, h1), (w0, w1) = hb[ri], wb[rj]
            inv = 1.0 / float((h1 - h0) * (w1 - w0))
            for i in range(h0, h1):
                for j in range(w0, w1):
                    pmat[cell, i * Wf + j] = inv
    for i in range(Hf):
        for j in range(Wf):
            cell = ((i * 2) // Hf) * 2 + ((j * 2) // Wf)
            emat[i * Wf + j, cell] = 1.0
    gw = (emat.sum(axis=0) / float(N)).astype(np.float32)
    return jnp.asarray(pmat), jnp.asarray(emat), jnp.asarray(gw)


# ----------------------------------------------------------------------------
# Parameter init (deterministic, synthetic)
# ----------------------------------------------------------------------------
def init_params(key):
    C = FEATURE_DIM
    Ch = C // SE_RATIO
    Kstem = PATCH * PATCH * 3
    names_shapes = [
        ("w_stem", (Kstem, C)), ("b_stem", (C,)),
        ("wq", (C, C)), ("wk", (C, C)), ("wv", (C, C)),
        ("sel_w1", (C, Ch)), ("sel_b1", (Ch,)), ("sel_w2", (Ch, C)), ("sel_b2", (C,)),
        ("w_app", (C, C)), ("b_app", (C,)),
        ("seg_w1", (C, Ch)), ("seg_b1", (Ch,)), ("seg_w2", (Ch, C)), ("seg_b2", (C,)),
        ("w_fuse", (2 * C, C)), ("b_fuse", (C,)),
        ("sef_w1", (C, Ch)), ("sef_b1", (Ch,)), ("sef_w2", (Ch, C)), ("sef_b2", (C,)),
        ("w_cls", (C, NUM_CLASSES)), ("b_cls", (NUM_CLASSES,)),
    ]
    params = {}
    keys = jax.random.split(key, len(names_shapes))
    for k, (name, shape) in zip(keys, names_shapes):
        params[name] = 0.02 * jax.random.normal(k, shape, jnp.float32)
    # BatchNorm (eval mode) of fc_fusion
    params["bn_gamma"] = jnp.ones((C,), jnp.float32)
    params["bn_beta"] = jnp.zeros((C,), jnp.float32)
    params["bn_mean"] = jnp.zeros((C,), jnp.float32)
    params["bn_var"] = jnp.ones((C,), jnp.float32)
    return params


# ----------------------------------------------------------------------------
# Forward pass
# ----------------------------------------------------------------------------
def forward(x_nchw, params):
    B, Cin, Himg, Wimg = x_nchw.shape
    Hf, Wf = Himg // PATCH, Wimg // PATCH
    N = Hf * Wf
    C = FEATURE_DIM
    Ch = C // SE_RATIO

    # ---- backbone stand-in: non-overlapping patch embed (8x8 conv == matmul).
    # Patch re-layout done in bf16 to halve the extra HBM round trip.
    # TODO(synk): fold this transpose/reshape into the stem kernel's DMA index_map.
    xb = jnp.transpose(x_nchw.astype(jnp.bfloat16), (0, 2, 3, 1))      # NHWC bf16
    patches = xb.reshape(B, Hf, PATCH, Wf, PATCH, Cin)
    patches = jnp.transpose(patches, (0, 1, 3, 2, 4, 5)).reshape(B * N, PATCH * PATCH * Cin)
    feat = stem_matmul(patches, params["w_stem"].astype(jnp.bfloat16),
                       params["b_stem"])                               # bf16 (B*N, C)
    feat = feat.reshape(B, N, C)

    # ---- static pooling / upsampling operators for the APP branch
    pmat, emat, gw1d = _pool_expand_mats(Hf, Wf)
    pmat = pmat.astype(jnp.bfloat16)
    emat = emat.astype(jnp.bfloat16)
    gw = jnp.broadcast_to(gw1d.reshape(POOL_PAD, 1), (POOL_PAD, C)).astype(jnp.float32)

    # ---- fold eval-mode BN of fc_fusion into the pre-split 1x1-conv weights
    eps = 1e-5
    bn_scale = params["bn_gamma"] * jax.lax.rsqrt(params["bn_var"] + eps)
    bn_shift = params["bn_beta"] - params["bn_mean"] * bn_scale
    wf_pra = params["w_fuse"][:C] * bn_scale[None, :]
    wf_app = params["w_fuse"][C:] * bn_scale[None, :]
    b_fuse = params["b_fuse"] * bn_scale + bn_shift

    def pad_c(v):
        return jnp.pad(v, (0, C - v.shape[0]))

    # ---- packed, bf16 head weights (9 refs instead of 25; f32 bias pack)
    packs = {
        "w_qkv": jnp.concatenate([params["wq"], params["wk"], params["wv"]],
                                 axis=1).astype(jnp.bfloat16),                     # (C, 3C)
        "w_misc": jnp.stack([params["w_app"], wf_pra, wf_app]).astype(jnp.bfloat16),  # (3, C, C)
        "se_w1t": jnp.concatenate([params["sel_w1"].T, params["seg_w1"].T,
                                   params["sef_w1"].T], axis=0).astype(jnp.bfloat16),  # (3*Ch, C)
        "se_w2": jnp.concatenate([params["sel_w2"], params["seg_w2"],
                                  params["sef_w2"]], axis=0).astype(jnp.bfloat16),     # (3*Ch, C)
        "bias": jnp.stack([pad_c(params["sel_b1"]), params["sel_b2"],
                           pad_c(params["seg_b1"]), params["seg_b2"],
                           pad_c(params["sef_b1"]), params["sef_b2"],
                           params["b_app"], b_fuse, pad_c(params["b_cls"])],
                          axis=0).astype(jnp.float32),                             # (9, C)
        "w_cls": params["w_cls"].astype(jnp.bfloat16),                             # (C, 7)
    }
    del Ch  # documented in packing shapes above

    # ---- single fused head kernel: PRA+SE, APP+SE, fusion, SE, pool, classifier
    # Dropout(0.25) is identity in eval mode.
    return fused_head(feat, pmat, emat, gw, packs)


if __name__ == "__main__":
    key = jax.random.PRNGKey(0)
    params = init_params(key)
    x = jax.random.normal(jax.random.fold_in(key, 123), (2, 3, 32, 32), jnp.float32)
    fwd = jax.jit(forward)
    out = jax.block_until_ready(fwd(x, params))
    assert out.shape == (2, NUM_CLASSES)
    assert bool(jnp.all(jnp.isfinite(out)))
    print("KERNEL_OK")
</pallas_src>

<mosaic_0001>
module attributes {stable_mosaic.version = 11 : i64} {
  func.func @_stem_kernel(%arg0: i32, %arg1: memref<32x192xbf16, #tpu.memory_space<vmem>>, %arg2: memref<192x128xbf16, #tpu.memory_space<vmem>>, %arg3: memref<1x128xf32, #tpu.memory_space<vmem>>, %arg4: memref<32x128xbf16, #tpu.memory_space<vmem>>) attributes {dimension_semantics = [#tpu.dimension_semantics<parallel>], iteration_bounds = array<i64: 1>, scalar_prefetch = 0 : i64, scratch_operands = 0 : i64, tpu.core_type = #tpu.core_type<tc>, window_params = [{transform_indices = @transform_0, window_bounds = array<i64: 32, 192>}, {pipeline_mode = #tpu.pipeline_mode<synchronous>, transform_indices = @transform_1, window_bounds = array<i64: 192, 128>}, {pipeline_mode = #tpu.pipeline_mode<synchronous>, transform_indices = @transform_2, window_bounds = array<i64: 1, 128>}, {transform_indices = @transform_3, window_bounds = array<i64: 32, 128>}]} {
    %c0 = arith.constant 0 : index
    %c0_0 = arith.constant 0 : index
    %0 = vector.load %arg1[%c0, %c0_0] : memref<32x192xbf16, #tpu.memory_space<vmem>>, vector<32x192xbf16>
    %c0_1 = arith.constant 0 : index
    %c0_2 = arith.constant 0 : index
    %1 = vector.load %arg2[%c0_1, %c0_2] : memref<192x128xbf16, #tpu.memory_space<vmem>>, vector<192x128xbf16>
    %cst = arith.constant dense<0.000000e+00> : vector<32x128xf32>
    %2 = tpu.matmul %0, %1, %cst {dimension_numbers = #tpu.dot_dimension_numbers<[1], [0], [0], [1], [0, 0, 1, 1], [], []>} : vector<32x192xbf16>, vector<192x128xbf16>, vector<32x128xf32> -> vector<32x128xf32>
    %c0_3 = arith.constant 0 : index
    %c0_4 = arith.constant 0 : index
    %3 = vector.load %arg3[%c0_3, %c0_4] : memref<1x128xf32, #tpu.memory_space<vmem>>, vector<1x128xf32>
    %4 = vector.broadcast %3 : vector<1x128xf32> to vector<32x128xf32>
    %5 = arith.addf %2, %4 : vector<32x128xf32>
    %cst_5 = arith.constant 0.000000e+00 : f32
    %6 = vector.broadcast %cst_5 : f32 to vector<32x128xf32>
    %7 = arith.maximumf %5, %6 : vector<32x128xf32>
    %8 = arith.truncf %7 : vector<32x128xf32> to vector<32x128xbf16>
    %c0_6 = arith.constant 0 : index
    %c0_7 = arith.constant 0 : index
    %9 = vector.load %arg4[%c0_6, %c0_7] : memref<32x128xbf16, #tpu.memory_space<vmem>>, vector<32x128xbf16>
    tpu.vector_store %arg4[%c0_6, %c0_7], %8 {strides = array<i32>} : memref<32x128xbf16, #tpu.memory_space<vmem>>, vector<32x128xbf16>,
    return
  }
  func.func @transform_0(%arg0: i32) -> (i32, i32) {
    %c0_i32 = arith.constant 0 : i32
    %c0_i32_0 = arith.constant 0 : i32
    return %arg0, %c0_i32 : i32, i32
  }
  func.func @transform_1(%arg0: i32) -> (i32, i32) {
    %c0_i32 = arith.constant 0 : i32
    %c0_i32_0 = arith.constant 0 : i32
    %c0_i32_1 = arith.constant 0 : i32
    return %c0_i32, %c0_i32_0 : i32, i32
  }
  func.func @transform_2(%arg0: i32) -> (i32, i32) {
    %c0_i32 = arith.constant 0 : i32
    %c0_i32_0 = arith.constant 0 : i32
    %c0_i32_1 = arith.constant 0 : i32
    return %c0_i32, %c0_i32_0 : i32, i32
  }
  func.func @transform_3(%arg0: i32) -> (i32, i32) {
    %c0_i32 = arith.constant 0 : i32
    %c0_i32_0 = arith.constant 0 : i32
    return %arg0, %c0_i32 : i32, i32
  }
}

module attributes {stable_mosaic.version = 11 : i64} {
  func.func @_head_kernel(%arg0: i32, %arg1: memref<1x16x128xbf16, #tpu.memory_space<vmem>>, %arg2: memref<8x16xbf16, #tpu.memory_space<vmem>>, %arg3: memref<16x8xbf16, #tpu.memory_space<vmem>>, %arg4: memref<8x128xf32, #tpu.memory_space<vmem>>, %arg5: memref<128x384xbf16, #tpu.memory_space<vmem>>, %arg6: memref<3x128x128xbf16, #tpu.memory_space<vmem>>, %arg7: memref<24x128xbf16, #tpu.memory_space<vmem>>, %arg8: memref<24x128xbf16, #tpu.memory_space<vmem>>, %arg9: memref<9x128xf32, #tpu.memory_space<vmem>>, %arg10: memref<128x7xbf16, #tpu.memory_space<vmem>>, %arg11: memref<1x1x7xf32, #tpu.memory_space<vmem>>) attributes {dimension_semantics = [#tpu.dimension_semantics<parallel>], iteration_bounds = array<i64: 2>, scalar_prefetch = 0 : i64, scratch_operands = 0 : i64, tpu.core_type = #tpu.core_type<tc>, window_params = [{transform_indices = @transform_0, window_bounds = array<i64: 1, 16, 128>}, {pipeline_mode = #tpu.pipeline_mode<synchronous>, transform_indices = @transform_1, window_bounds = array<i64: 8, 16>}, {pipeline_mode = #tpu.pipeline_mode<synchronous>, transform_indices = @transform_2, window_bounds = array<i64: 16, 8>}, {pipeline_mode = #tpu.pipeline_mode<synchronous>, transform_indices = @transform_3, window_bounds = array<i64: 8, 128>}, {pipeline_mode = #tpu.pipeline_mode<synchronous>, transform_indices = @transform_4, window_bounds = array<i64: 128, 384>}, {pipeline_mode = #tpu.pipeline_mode<synchronous>, transform_indices = @transform_5, window_bounds = array<i64: 3, 128, 128>}, {pipeline_mode = #tpu.pipeline_mode<synchronous>, transform_indices = @transform_6, window_bounds = array<i64: 24, 128>}, {pipeline_mode = #tpu.pipeline_mode<synchronous>, transform_indices = @transform_7, window_bounds = array<i64: 24, 128>}, {pipeline_mode = #tpu.pipeline_mode<synchronous>, transform_indices = @transform_8, window_bounds = array<i64: 9, 128>}, {pipeline_mode = #tpu.pipeline_mode<synchronous>, transform_indices = @transform_9, window_bounds = array<i64: 128, 7>}, {transform_indices = @transform_10, window_bounds = array<i64: 1, 1, 7>}]} {
    %c0 = arith.constant 0 : index
    %c0_0 = arith.constant 0 : index
    %c0_1 = arith.constant 0 : index
    %0 = vector.load %arg1[%c0, %c0_0, %c0_1] : memref<1x16x128xbf16, #tpu.memory_space<vmem>>, vector<1x16x128xbf16>
    %1 = vector.shape_cast %0 : vector<1x16x128xbf16> to vector<16x128xbf16>
    %c0_2 = arith.constant 0 : index
    %c0_3 = arith.constant 0 : index
    %2 = vector.load %arg5[%c0_2, %c0_3] : memref<128x384xbf16, #tpu.memory_space<vmem>>, vector<128x384xbf16>
    %cst = arith.constant dense<0.000000e+00> : vector<16x384xf32>
    %3 = tpu.matmul %1, %2, %cst {dimension_numbers = #tpu.dot_dimension_numbers<[1], [0], [0], [1], [0, 0, 1, 1], [], []>} : vector<16x128xbf16>, vector<128x384xbf16>, vector<16x384xf32> -> vector<16x384xf32>
    %4 = vector.extract_strided_slice %3 {offsets = [0, 0], sizes = [16, 128], strides = [1, 1]} : vector<16x384xf32> to vector<16x128xf32>
    %5 = arith.truncf %4 : vector<16x128xf32> to vector<16x128xbf16>
    %6 = vector.shape_cast %5 : vector<16x128xbf16> to vector<1x16x128xbf16>
    %7 = vector.extract_strided_slice %3 {offsets = [0, 128], sizes = [16, 128], strides = [1, 1]} : vector<16x384xf32> to vector<16x128xf32>
    %8 = arith.truncf %7 : vector<16x128xf32> to vector<16x128xbf16>
    %9 = vector.shape_cast %8 : vector<16x128xbf16> to vector<1x16x128xbf16>
    %10 = vector.extract_strided_slice %3 {offsets = [0, 256], sizes = [16, 128], strides = [1, 1]} : vector<16x384xf32> to vector<16x128xf32>
    %11 = arith.truncf %10 : vector<16x128xf32> to vector<16x128xbf16>
    %12 = vector.shape_cast %11 : vector<16x128xbf16> to vector<1x16x128xbf16>
    "tpu.trace_start"() <{level = 10 : i32, message = "bnd,bmd->bnm"}> : () -> ()
    %cst_4 = arith.constant dense<0.000000e+00> : vector<1x16x16xf32>
    %13 = tpu.matmul %6, %9, %cst_4 {dimension_numbers = #tpu.dot_dimension_numbers<[2], [2], [1], [1], [0, 0, 0, 1, 1, 1], [0], [0]>} : vector<1x16x128xbf16>, vector<1x16x128xbf16>, vector<1x16x16xf32> -> vector<1x16x16xf32>
    "tpu.trace_stop"() : () -> ()
    %cst_5 = arith.constant 0.0883883461 : f32
    %14 = vector.broadcast %cst_5 : f32 to vector<1x16x16xf32>
    %15 = arith.mulf %13, %14 : vector<1x16x16xf32>
    %cst_6 = arith.constant dense<0xFF800000> : vector<1x16xf32>
    %16 = vector.multi_reduction <maximumf>, %15, %cst_6 [2] : vector<1x16x16xf32> to vector<1x16xf32>
    %17 = vector.shape_cast %16 : vector<1x16xf32> to vector<1x16x1xf32>
    %18 = vector.broadcast %17 : vector<1x16x1xf32> to vector<1x16x16xf32>
    %19 = arith.subf %15, %18 : vector<1x16x16xf32>
    %20 = math.exp %19 : vector<1x16x16xf32>
    %cst_7 = arith.constant dense<0.000000e+00> : vector<1x16xf32>
    %21 = vector.multi_reduction <add>, %20, %cst_7 [2] : vector<1x16x16xf32> to vector<1x16xf32>
    %22 = vector.shape_cast %21 : vector<1x16xf32> to vector<1x16x1xf32>
    %23 = tpu.reciprocal %22 {approx = true} : vector<1x16x1xf32> -> vector<1x16x1xf32>
    %24 = vector.broadcast %23 : vector<1x16x1xf32> to vector<1x16x16xf32>
    %25 = arith.mulf %20, %24 : vector<1x16x16xf32>
    %26 = arith.truncf %25 : vector<1x16x16xf32> to vector<1x16x16xbf16>
    "tpu.trace_start"() <{level = 10 : i32, message = "bnm,bmd->bnd"}> : () -> ()
    %cst_8 = arith.constant dense<0.000000e+00> : vector<1x16x128xf32>
    %27 = tpu.matmul %26, %12, %cst_8 {dimension_numbers = #tpu.dot_dimension_numbers<[2], [1], [1], [2], [0, 0, 0, 1, 1, 2], [0], [0]>} : vector<1x16x16xbf16>, vector<1x16x128xbf16>, vector<1x16x128xf32> -> vector<1x16x128xf32>
    "tpu.trace_stop"() : () -> ()
    %28 = arith.extf %0 : vector<1x16x128xbf16> to vector<1x16x128xf32>
    %29 = arith.addf %27, %28 : vector<1x16x128xf32>
    %cst_9 = arith.constant dense<0.000000e+00> : vector<1x128xf32>
    %30 = vector.multi_reduction <add>, %29, %cst_9 [1] : vector<1x16x128xf32> to vector<1x128xf32>
    %cst_10 = arith.constant 1.600000e+01 : f32
    %31 = vector.broadcast %cst_10 : f32 to vector<1x128xf32>
    %32 = arith.divf %30, %31 : vector<1x128xf32>
    %c0_11 = arith.constant 0 : index
    %c0_12 = arith.constant 0 : index
    %33 = vector.load %arg7[%c0_11, %c0_12] : memref<24x128xbf16, #tpu.memory_space<vmem>>, vector<8x128xbf16>
    %c0_13 = arith.constant 0 : index
    %c0_14 = arith.constant 0 : index
    %34 = vector.load %arg8[%c0_13, %c0_14] : memref<24x128xbf16, #tpu.memory_space<vmem>>, vector<8x128xbf16>
    %c0_15 = arith.constant 0 : index
    %c0_16 = arith.constant 0 : index
    %35 = vector.load %arg9[%c0_15, %c0_16] : memref<9x128xf32, #tpu.memory_space<vmem>>, vector<1x8xf32>
    %c1 = arith.constant 1 : index
    %c0_17 = arith.constant 0 : index
    %36 = vector.load %arg9[%c1, %c0_17] : memref<9x128xf32, #tpu.memory_space<vmem>>, vector<1x128xf32>
    %37 = arith.truncf %32 : vector<1x128xf32> to vector<1x128xbf16>
    %cst_18 = arith.constant dense<0.000000e+00> : vector<1x8xf32>
    %38 = tpu.matmul %37, %33, %cst_18 {dimension_numbers = #tpu.dot_dimension_numbers<[1], [1], [0], [0], [0, 0, 1, 0], [], []>} : vector<1x128xbf16>, vector<8x128xbf16>, vector<1x8xf32> -> vector<1x8xf32>
    %39 = arith.addf %38, %35 : vector<1x8xf32>
    %cst_19 = arith.constant 0.000000e+00 : f32
    %40 = vector.broadcast %cst_19 : f32 to vector<1x8xf32>
    %41 = arith.maximumf %39, %40 : vector<1x8xf32>
    %42 = arith.truncf %41 : vector<1x8xf32> to vector<1x8xbf16>
    %cst_20 = arith.constant dense<0.000000e+00> : vector<1x128xf32>
    %43 = tpu.matmul %42, %34, %cst_20 {dimension_numbers = #tpu.dot_dimension_numbers<[1], [0], [0], [1], [0, 0, 1, 1], [], []>} : vector<1x8xbf16>, vector<8x128xbf16>, vector<1x128xf32> -> vector<1x128xf32>
    %44 = arith.addf %43, %36 : vector<1x128xf32>
    %45 = arith.negf %44 : vector<1x128xf32>
    %46 = math.exp %45 : vector<1x128xf32>
    %cst_21 = arith.constant 1.000000e+00 : f32
    %47 = vector.broadcast %cst_21 : f32 to vector<1x128xf32>
    %48 = arith.addf %47, %46 : vector<1x128xf32>
    %49 = arith.divf %47, %48 : vector<1x128xf32>
    %50 = vector.shape_cast %49 : vector<1x128xf32> to vector<1x1x128xf32>
    %51 = vector.broadcast %50 : vector<1x1x128xf32> to vector<1x16x128xf32>
    %52 = arith.mulf %29, %51 : vector<1x16x128xf32>
    %53 = arith.truncf %52 : vector<1x16x128xf32> to vector<1x16x128xbf16>
    %c0_22 = arith.constant 0 : index
    %c0_23 = arith.constant 0 : index
    %54 = vector.load %arg2[%c0_22, %c0_23] : memref<8x16xbf16, #tpu.memory_space<vmem>>, vector<8x16xbf16>
    %55 = vector.shape_cast %54 : vector<8x16xbf16> to vector<1x8x16xbf16>
    "tpu.trace_start"() <{level = 10 : i32, message = "bpn,bnd->bpd"}> : () -> ()
    %cst_24 = arith.constant dense<0.000000e+00> : vector<1x8x128xf32>
    %56 = tpu.matmul %55, %0, %cst_24 {dimension_numbers = #tpu.dot_dimension_numbers<[2], [1], [1], [2], [0, 0, 0, 1, 1, 2], [0], [0]>} : vector<1x8x16xbf16>, vector<1x16x128xbf16>, vector<1x8x128xf32> -> vector<1x8x128xf32>
    "tpu.trace_stop"() : () -> ()
    %c0_25 = arith.constant 0 : index
    %c0_26 = arith.constant 0 : index
    %c0_27 = arith.constant 0 : index
    %57 = vector.load %arg6[%c0_25, %c0_26, %c0_27] : memref<3x128x128xbf16, #tpu.memory_space<vmem>>, vector<1x128x128xbf16>
    %58 = vector.shape_cast %57 : vector<1x128x128xbf16> to vector<128x128xbf16>
    %59 = arith.truncf %56 : vector<1x8x128xf32> to vector<1x8x128xbf16>
    "tpu.trace_start"() <{level = 10 : i32, message = "bpd,de->bpe"}> : () -> ()
    %cst_28 = arith.constant dense<0.000000e+00> : vector<1x8x128xf32>
    %60 = tpu.matmul %59, %58, %cst_28 {dimension_numbers = #tpu.dot_dimension_numbers<[2], [0], [0, 1], [1], [0, 0, 0, 1, 1, 1], [], []>} : vector<1x8x128xbf16>, vector<128x128xbf16>, vector<1x8x128xf32> -> vector<1x8x128xf32>
    "tpu.trace_stop"() : () -> ()
    %c6 = arith.constant 6 : index
    %c0_29 = arith.constant 0 : index
    %61 = vector.load %arg9[%c6, %c0_29] : memref<9x128xf32, #tpu.memory_space<vmem>>, vector<1x128xf32>
    %62 = vector.shape_cast %61 : vector<1x128xf32> to vector<1x1x128xf32>
    %63 = vector.broadcast %62 : vector<1x1x128xf32> to vector<1x8x128xf32>
    %64 = arith.addf %60, %63 : vector<1x8x128xf32>
    %cst_30 = arith.constant 0.000000e+00 : f32
    %65 = vector.broadcast %cst_30 : f32 to vector<1x8x128xf32>
    %66 = arith.maximumf %64, %65 : vector<1x8x128xf32>
    %c0_31 = arith.constant 0 : index
    %c0_32 = arith.constant 0 : index
    %67 = vector.load %arg4[%c0_31, %c0_32] : memref<8x128xf32, #tpu.memory_space<vmem>>, vector<8x128xf32>
    %68 = vector.shape_cast %67 : vector<8x128xf32> to vector<1x8x128xf32>
    %69 = arith.mulf %66, %68 : vector<1x8x128xf32>
    %cst_33 = arith.constant dense<0.000000e+00> : vector<1x128xf32>
    %70 = vector.multi_reduction <add>, %69, %cst_33 [1] : vector<1x8x128xf32> to vector<1x128xf32>
    %c8 = arith.constant 8 : index
    %c0_34 = arith.constant 0 : index
    %71 = vector.load %arg7[%c8, %c0_34] : memref<24x128xbf16, #tpu.memory_space<vmem>>, vector<8x128xbf16>
    %c8_35 = arith.constant 8 : index
    %c0_36 = arith.constant 0 : index
    %72 = vector.load %arg8[%c8_35, %c0_36] : memref<24x128xbf16, #tpu.memory_space<vmem>>, vector<8x128xbf16>
    %c2 = arith.constant 2 : index
    %c0_37 = arith.constant 0 : index
    %73 = vector.load %arg9[%c2, %c0_37] : memref<9x128xf32, #tpu.memory_space<vmem>>, vector<1x8xf32>
    %c3 = arith.constant 3 : index
    %c0_38 = arith.constant 0 : index
    %74 = vector.load %arg9[%c3, %c0_38] : memref<9x128xf32, #tpu.memory_space<vmem>>, vector<1x128xf32>
    %75 = arith.truncf %70 : vector<1x128xf32> to vector<1x128xbf16>
    %cst_39 = arith.constant dense<0.000000e+00> : vector<1x8xf32>
    %76 = tpu.matmul %75, %71, %cst_39 {dimension_numbers = #tpu.dot_dimension_numbers<[1], [1], [0], [0], [0, 0, 1, 0], [], []>} : vector<1x128xbf16>, vector<8x128xbf16>, vector<1x8xf32> -> vector<1x8xf32>
    %77 = arith.addf %76, %73 : vector<1x8xf32>
    %cst_40 = arith.constant 0.000000e+00 : f32
    %78 = vector.broadcast %cst_40 : f32 to vector<1x8xf32>
    %79 = arith.maximumf %77, %78 : vector<1x8xf32>
    %80 = arith.truncf %79 : vector<1x8xf32> to vector<1x8xbf16>
    %cst_41 = arith.constant dense<0.000000e+00> : vector<1x128xf32>
    %81 = tpu.matmul %80, %72, %cst_41 {dimension_numbers = #tpu.dot_dimension_numbers<[1], [0], [0], [1], [0, 0, 1, 1], [], []>} : vector<1x8xbf16>, vector<8x128xbf16>, vector<1x128xf32> -> vector<1x128xf32>
    %82 = arith.addf %81, %74 : vector<1x128xf32>
    %83 = arith.negf %82 : vector<1x128xf32>
    %84 = math.exp %83 : vector<1x128xf32>
    %cst_42 = arith.constant 1.000000e+00 : f32
    %85 = vector.broadcast %cst_42 : f32 to vector<1x128xf32>
    %86 = arith.addf %85, %84 : vector<1x128xf32>
    %87 = arith.divf %85, %86 : vector<1x128xf32>
    %88 = vector.shape_cast %87 : vector<1x128xf32> to vector<1x1x128xf32>
    %89 = vector.broadcast %88 : vector<1x1x128xf32> to vector<1x8x128xf32>
    %90 = arith.mulf %66, %89 : vector<1x8x128xf32>
    %91 = arith.truncf %90 : vector<1x8x128xf32> to vector<1x8x128xbf16>
    %c1_43 = arith.constant 1 : index
    %c0_44 = arith.constant 0 : index
    %c0_45 = arith.constant 0 : index
    %92 = vector.load %arg6[%c1_43, %c0_44, %c0_45] : memref<3x128x128xbf16, #tpu.memory_space<vmem>>, vector<1x128x128xbf16>
    %93 = vector.shape_cast %92 : vector<1x128x128xbf16> to vector<128x128xbf16>
    %c2_46 = arith.constant 2 : index
    %c0_47 = arith.constant 0 : index
    %c0_48 = arith.constant 0 : index
    %94 = vector.load %arg6[%c2_46, %c0_47, %c0_48] : memref<3x128x128xbf16, #tpu.memory_space<vmem>>, vector<1x128x128xbf16>
    %95 = vector.shape_cast %94 : vector<1x128x128xbf16> to vector<128x128xbf16>
    "tpu.trace_start"() <{level = 10 : i32, message = "bpd,de->bpe"}> : () -> ()
    %cst_49 = arith.constant dense<0.000000e+00> : vector<1x8x128xf32>
    %96 = tpu.matmul %91, %95, %cst_49 {dimension_numbers = #tpu.dot_dimension_numbers<[2], [0], [0, 1], [1], [0, 0, 0, 1, 1, 1], [], []>} : vector<1x8x128xbf16>, vector<128x128xbf16>, vector<1x8x128xf32> -> vector<1x8x128xf32>
    "tpu.trace_stop"() : () -> ()
    %c0_50 = arith.constant 0 : index
    %c0_51 = arith.constant 0 : index
    %97 = vector.load %arg3[%c0_50, %c0_51] : memref<16x8xbf16, #tpu.memory_space<vmem>>, vector<16x8xbf16>
    %98 = vector.shape_cast %97 : vector<16x8xbf16> to vector<1x16x8xbf16>
    %99 = arith.truncf %96 : vector<1x8x128xf32> to vector<1x8x128xbf16>
    "tpu.trace_start"() <{level = 10 : i32, message = "bnp,bpe->bne"}> : () -> ()
    %cst_52 = arith.constant dense<0.000000e+00> : vector<1x16x128xf32>
    %100 = tpu.matmul %98, %99, %cst_52 {dimension_numbers = #tpu.dot_dimension_numbers<[2], [1], [1], [2], [0, 0, 0, 1, 1, 2], [0], [0]>} : vector<1x16x8xbf16>, vector<1x8x128xbf16>, vector<1x16x128xf32> -> vector<1x16x128xf32>
    "tpu.trace_stop"() : () -> ()
    %101 = vector.shape_cast %53 : vector<1x16x128xbf16> to vector<16x128xbf16>
    %cst_53 = arith.constant dense<0.000000e+00> : vector<16x128xf32>
    %102 = tpu.matmul %101, %93, %cst_53 {dimension_numbers = #tpu.dot_dimension_numbers<[1], [0], [0], [1], [0, 0, 1, 1], [], []>} : vector<16x128xbf16>, vector<128x128xbf16>, vector<16x128xf32> -> vector<16x128xf32>
    %103 = vector.shape_cast %102 : vector<16x128xf32> to vector<1x16x128xf32>
    %104 = arith.addf %103, %100 : vector<1x16x128xf32>
    %c7 = arith.constant 7 : index
    %c0_54 = arith.constant 0 : index
    %105 = vector.load %arg9[%c7, %c0_54] : memref<9x128xf32, #tpu.memory_space<vmem>>, vector<1x128xf32>
    %106 = vector.shape_cast %105 : vector<1x128xf32> to vector<1x1x128xf32>
    %107 = vector.broadcast %106 : vector<1x1x128xf32> to vector<1x16x128xf32>
    %108 = arith.addf %104, %107 : vector<1x16x128xf32>
    %cst_55 = arith.constant 0.000000e+00 : f32
    %109 = vector.broadcast %cst_55 : f32 to vector<1x16x128xf32>
    %110 = arith.maximumf %108, %109 : vector<1x16x128xf32>
    %cst_56 = arith.constant dense<0.000000e+00> : vector<1x128xf32>
    %111 = vector.multi_reduction <add>, %110, %cst_56 [1] : vector<1x16x128xf32> to vector<1x128xf32>
    %cst_57 = arith.constant 1.600000e+01 : f32
    %112 = vector.broadcast %cst_57 : f32 to vector<1x128xf32>
    %113 = arith.divf %111, %112 : vector<1x128xf32>
    %c16 = arith.constant 16 : index
    %c0_58 = arith.constant 0 : index
    %114 = vector.load %arg7[%c16, %c0_58] : memref<24x128xbf16, #tpu.memory_space<vmem>>, vector<8x128xbf16>
    %c16_59 = arith.constant 16 : index
    %c0_60 = arith.constant 0 : index
    %115 = vector.load %arg8[%c16_59, %c0_60] : memref<24x128xbf16, #tpu.memory_space<vmem>>, vector<8x128xbf16>
    %c4 = arith.constant 4 : index
    %c0_61 = arith.constant 0 : index
    %116 = vector.load %arg9[%c4, %c0_61] : memref<9x128xf32, #tpu.memory_space<vmem>>, vector<1x8xf32>
    %c5 = arith.constant 5 : index
    %c0_62 = arith.constant 0 : index
    %117 = vector.load %arg9[%c5, %c0_62] : memref<9x128xf32, #tpu.memory_space<vmem>>, vector<1x128xf32>
    %118 = arith.truncf %113 : vector<1x128xf32> to vector<1x128xbf16>
    %cst_63 = arith.constant dense<0.000000e+00> : vector<1x8xf32>
    %119 = tpu.matmul %118, %114, %cst_63 {dimension_numbers = #tpu.dot_dimension_numbers<[1], [1], [0], [0], [0, 0, 1, 0], [], []>} : vector<1x128xbf16>, vector<8x128xbf16>, vector<1x8xf32> -> vector<1x8xf32>
    %120 = arith.addf %119, %116 : vector<1x8xf32>
    %cst_64 = arith.constant 0.000000e+00 : f32
    %121 = vector.broadcast %cst_64 : f32 to vector<1x8xf32>
    %122 = arith.maximumf %120, %121 : vector<1x8xf32>
    %123 = arith.truncf %122 : vector<1x8xf32> to vector<1x8xbf16>
    %cst_65 = arith.constant dense<0.000000e+00> : vector<1x128xf32>
    %124 = tpu.matmul %123, %115, %cst_65 {dimension_numbers = #tpu.dot_dimension_numbers<[1], [0], [0], [1], [0, 0, 1, 1], [], []>} : vector<1x8xbf16>, vector<8x128xbf16>, vector<1x128xf32> -> vector<1x128xf32>
    %125 = arith.addf %124, %117 : vector<1x128xf32>
    %126 = arith.negf %125 : vector<1x128xf32>
    %127 = math.exp %126 : vector<1x128xf32>
    %cst_66 = arith.constant 1.000000e+00 : f32
    %128 = vector.broadcast %cst_66 : f32 to vector<1x128xf32>
    %129 = arith.addf %128, %127 : vector<1x128xf32>
    %130 = arith.divf %128, %129 : vector<1x128xf32>
    %131 = arith.mulf %113, %130 : vector<1x128xf32>
    %132 = arith.truncf %131 : vector<1x128xf32> to vector<1x128xbf16>
    %c0_67 = arith.constant 0 : index
    %c0_68 = arith.constant 0 : index
    %133 = vector.load %arg10[%c0_67, %c0_68] : memref<128x7xbf16, #tpu.memory_space<vmem>>, vector<128x7xbf16>
    %cst_69 = arith.constant dense<0.000000e+00> : vector<1x7xf32>
    %134 = tpu.matmul %132, %133, %cst_69 {dimension_numbers = #tpu.dot_dimension_numbers<[1], [0], [0], [1], [0, 0, 1, 1], [], []>} : vector<1x128xbf16>, vector<128x7xbf16>, vector<1x7xf32> -> vector<1x7xf32>
    %c8_70 = arith.constant 8 : index
    %c0_71 = arith.constant 0 : index
    %135 = vector.load %arg9[%c8_70, %c0_71] : memref<9x128xf32, #tpu.memory_space<vmem>>, vector<1x7xf32>
    %136 = arith.addf %134, %135 : vector<1x7xf32>
    %c0_72 = arith.constant 0 : index
    %c0_73 = arith.constant 0 : index
    %c0_74 = arith.constant 0 : index
    %137 = vector.load %arg11[%c0_72, %c0_73, %c0_74] : memref<1x1x7xf32, #tpu.memory_space<vmem>>, vector<1x1x7xf32>
    %138 = vector.shape_cast %137 : vector<1x1x7xf32> to vector<1x7xf32>
    %139 = vector.shape_cast %136 : vector<1x7xf32> to vector<1x1x7xf32>
    tpu.vector_store %arg11[%c0_72, %c0_73, %c0_74], %139 {strides = array<i32>} : memref<1x1x7xf32, #tpu.memory_space<vmem>>, vector<1x1x7xf32>,
    return
  }
  func.func @transform_0(%arg0: i32) -> (i32, i32, i32) {
    %c0_i32 = arith.constant 0 : i32
    %c0_i32_0 = arith.constant 0 : i32
    %c0_i32_1 = arith.constant 0 : i32
    return %arg0, %c0_i32, %c0_i32_0 : i32, i32, i32
  }
  func.func @transform_1(%arg0: i32) -> (i32, i32) {
    %c0_i32 = arith.constant 0 : i32
    %c0_i32_0 = arith.constant 0 : i32
    %c0_i32_1 = arith.constant 0 : i32
    return %c0_i32, %c0_i32_0 : i32, i32
  }
  func.func @transform_2(%arg0: i32) -> (i32, i32) {
    %c0_i32 = arith.constant 0 : i32
    %c0_i32_0 = arith.constant 0 : i32
    %c0_i32_1 = arith.constant 0 : i32
    return %c0_i32, %c0_i32_0 : i32, i32
  }
  func.func @transform_3(%arg0: i32) -> (i32, i32) {
    %c0_i32 = arith.constant 0 : i32
    %c0_i32_0 = arith.constant 0 : i32
    %c0_i32_1 = arith.constant 0 : i32
    return %c0_i32, %c0_i32_0 : i32, i32
  }
  func.func @transform_4(%arg0: i32) -> (i32, i32) {
    %c0_i32 = arith.constant 0 : i32
    %c0_i32_0 = arith.constant 0 : i32
    %c0_i32_1 = arith.constant 0 : i32
    return %c0_i32, %c0_i32_0 : i32, i32
  }
  func.func @transform_5(%arg0: i32) -> (i32, i32, i32) {
    %c0_i32 = arith.constant 0 : i32
    %c0_i32_0 = arith.constant 0 : i32
    %c0_i32_1 = arith.constant 0 : i32
    %c0_i32_2 = arith.constant 0 : i32
    return %c0_i32, %c0_i32_0, %c0_i32_1 : i32, i32, i32
  }
  func.func @transform_6(%arg0: i32) -> (i32, i32) {
    %c0_i32 = arith.constant 0 : i32
    %c0_i32_0 = arith.constant 0 : i32
    %c0_i32_1 = arith.constant 0 : i32
    return %c0_i32, %c0_i32_0 : i32, i32
  }
  func.func @transform_7(%arg0: i32) -> (i32, i32) {
    %c0_i32 = arith.constant 0 : i32
    %c0_i32_0 = arith.constant 0 : i32
    %c0_i32_1 = arith.constant 0 : i32
    return %c0_i32, %c0_i32_0 : i32, i32
  }
  func.func @transform_8(%arg0: i32) -> (i32, i32) {
    %c0_i32 = arith.constant 0 : i32
    %c0_i32_0 = arith.constant 0 : i32
    %c0_i32_1 = arith.constant 0 : i32
    return %c0_i32, %c0_i32_0 : i32, i32
  }
  func.func @transform_9(%arg0: i32) -> (i32, i32) {
    %c0_i32 = arith.constant 0 : i32
    %c0_i32_0 = arith.constant 0 : i32
    %c0_i32_1 = arith.constant 0 : i32
    return %c0_i32, %c0_i32_0 : i32, i32
  }
  func.func @transform_10(%arg0: i32) -> (i32, i32, i32) {
    %c0_i32 = arith.constant 0 : i32
    %c0_i32_0 = arith.constant 0 : i32
    %c0_i32_1 = arith.constant 0 : i32
    return %arg0, %c0_i32, %c0_i32_0 : i32, i32, i32
  }
}

</mosaic_0001>

<llo_original>
// kernel: forward.2
$region0: #{forward.2}
  #allocation0 [shape = 'u32[]', space=smem, size = 0x4, offset = 0x4, fixed_abs, tag = 'smem constant byte address 0x4 - core index']
  #allocation1 [shape = 'u32[144,128]{1,0:T(1,128)}', space=vmem, size = 0x12000, scoped, tag = 'internal scratch']
  %s0 = inlined_call_operand.vmem [shape: bf16[32,192], index: 0, kind: input, shape index: {}]
  %s1 = inlined_call_operand.vmem [shape: bf16[192,128], index: 1, kind: input, shape index: {}]
  %s2 = inlined_call_operand.vmem [shape: f32[1,128], index: 2, kind: input, shape index: {}]
  %s3 = inlined_call_operand.vmem [shape: bf16[32,128], index: 3, kind: output, shape index: {}]
  %s4 = sld [smem:[#allocation0]]
  $region22: #{forward.2} parent=0
    _
  %s6 = ssub.s32 1, %s4
  %s7 = scalar_select 0, %s6, %s4
  // Predicated region
  $region2: #{forward.2} parent=0 // pred_check
    _
  $region3: #{forward.2} parent=0 // pred_check_branch
    %9 = sbr.rel (0) target = $region5
  $region4: #{forward.2} parent=0 // pred_region
    _
  $region5: #{forward.2} parent=0 // pred_fallthru
    _
  // Predicated region
  $region6: #{forward.2} parent=0 // pred_check
    _
  $region7: #{forward.2} parent=0 // pred_check_branch
    %11 = sbr.rel (0) target = $region9
  $region8: #{forward.2} parent=0 // pred_region
    _
  $region9: #{forward.2} parent=0 // pred_fallthru
    _
  // Predicated region
  $region10: #{forward.2} parent=0 // pred_check
    _
  $region11: #{forward.2} parent=0 // pred_check_branch
    %13 = sbr.rel (0) target = $region13
  $region12: #{forward.2} parent=0 // pred_region
    _
  $region13: #{forward.2} parent=0 // pred_fallthru
    _
  %v15 = vld [vmem:[%s0] sm:$0xff]
  %v16 = vld [vmem:[%s0 + $0x8] sm:$0xff]
  %v17 = vld [vmem:[%s0 + $0x10] sm:$0xff]
  %v18 = vld [vmem:[%s0 + $0x18] sm:$0xff]
  %v19 = vld [vmem:[%s1] sm:$0xf]
  %v20 = vld [vmem:[%s1 + $0x4] sm:$0xf]
  %v21 = vld [vmem:[%s1 + $0x8] sm:$0xf]
  %v22 = vld [vmem:[%s1 + $0xc] sm:$0xf]
  %v23 = vld [vmem:[%s1 + $0x10] sm:$0xf]
  %v24 = vld [vmem:[%s1 + $0x14] sm:$0xf]
  %v25 = vld [vmem:[%s1 + $0x18] sm:$0xf]
  %v26 = vld [vmem:[%s1 + $0x1c] sm:$0xf]
  %v27 = vld [vmem:[%s1 + $0x20] sm:$0xf]
  %v28 = vld [vmem:[%s1 + $0x24] sm:$0xf]
  %v29 = vld [vmem:[%s1 + $0x28] sm:$0xf]
  %v30 = vld [vmem:[%s1 + $0x2c] sm:$0xf]
  %v31 = vld [vmem:[%s1 + $0x30] sm:$0xf]
  %v32 = vld [vmem:[%s1 + $0x34] sm:$0xf]
  %v33 = vld [vmem:[%s1 + $0x38] sm:$0xf]
  %v34 = vld [vmem:[%s1 + $0x3c] sm:$0xf]
  %v35 = vld [vmem:[%s1 + $0x40] sm:$0xf]
  %v36 = vld [vmem:[%s1 + $0x44] sm:$0xf]
  %v37 = vld [vmem:[%s1 + $0x48] sm:$0xf]
  %v38 = vld [vmem:[%s1 + $0x4c] sm:$0xf]
  %v39 = vld [vmem:[%s1 + $0x50] sm:$0xf]
  %v40 = vld [vmem:[%s1 + $0x54] sm:$0xf]
  %v41 = vld [vmem:[%s1 + $0x58] sm:$0xf]
  %v42 = vld [vmem:[%s1 + $0x5c] sm:$0xf]
  %v43 = vld [vmem:[%s2] sm:$0x1]
  %v45 = vlaneseq
  %v46 = vshrl.u32 %v45, 7
  %v47 = vsub.s32 0, %v46
  %v48 = vrot.slane %v43, %v47
  %v54 = vunpack.c.l.b16 %v15
  %v55 = vunpack.c.h.b16 %v15
  %v56 = vunpack.c.l.b16 %v16
  %v57 = vunpack.c.h.b16 %v16
  %v58 = vunpack.c.l.b16 %v17
  %v59 = vunpack.c.h.b16 %v17
  %v60 = vunpack.c.l.b16 %v18
  %v61 = vunpack.c.h.b16 %v18
  %v62 = vpack.c.b16 %v56, %v54
  %v63 = vpack.c.b16 %v57, %v55
  %v64 = vpack.c.b16 %v60, %v58
  %v65 = vpack.c.b16 %v61, %v59
  %v92 = vunpack.c.l.b16 %v19
  %v93 = vunpack.c.l.b16 %v20
  %v94 = vunpack.c.l.b16 %v21
  %v95 = vunpack.c.l.b16 %v22
  %v96 = vunpack.c.l.b16 %v23
  %v97 = vunpack.c.l.b16 %v24
  %v98 = vunpack.c.l.b16 %v25
  %v99 = vunpack.c.l.b16 %v26
  %v100 = vunpack.c.l.b16 %v27
  %v101 = vunpack.c.l.b16 %v28
  %v102 = vunpack.c.l.b16 %v29
  %v103 = vunpack.c.l.b16 %v30
  %v104 = vunpack.c.l.b16 %v31
  %v105 = vunpack.c.l.b16 %v32
  %v106 = vunpack.c.l.b16 %v33
  %v107 = vunpack.c.l.b16 %v34
  %v108 = vunpack.c.l.b16 %v35
  %v109 = vunpack.c.l.b16 %v36
  %v110 = vunpack.c.l.b16 %v37
  %v111 = vunpack.c.l.b16 %v38
  %v112 = vunpack.c.l.b16 %v39
  %v113 = vunpack.c.l.b16 %v40
  %v114 = vunpack.c.l.b16 %v41
  %v115 = vunpack.c.l.b16 %v42
  %v116 = vpack.c.b16 %v93, %v92
  %v117 = vpack.c.b16 %v95, %v94
  %v118 = vpack.c.b16 %v97, %v96
  %v119 = vpack.c.b16 %v99, %v98
  %v120 = vpack.c.b16 %v101, %v100
  %v121 = vpack.c.b16 %v103, %v102
  %v122 = vpack.c.b16 %v105, %v104
  %v123 = vpack.c.b16 %v107, %v106
  %v124 = vpack.c.b16 %v109, %v108
  %v125 = vpack.c.b16 %v111, %v110
  %v126 = vpack.c.b16 %v113, %v112
  %v127 = vpack.c.b16 %v115, %v114
  %vm140 = vcmask 523264
  %v142 = vsel %vm140, %v63, 0
  %v145 = vsel %vm140, %v65, 0
  %147 = vmatprep.subr.bf16.mxu0 0
  %148 = vmatpush1.bf16.msra.mxu0 %v116
  %149 = vmatprep.subr.bf16.mxu0 0
  %150 = vmatpush1.bf16.msra.mxu0 %v117
  %151 = vmatprep.subr.bf16.mxu0 0
  %152 = vmatpush1.bf16.msra.mxu0 %v118
  %153 = vmatprep.subr.bf16.mxu0 0
  %154 = vmatpush1.bf16.msra.mxu0 %v119
  %155 = vmatprep.subr.bf16.mxu0 0
  %156 = vmatpush1.bf16.msra.mxu0 %v120
  %157 = vmatprep.subr.bf16.mxu0 0
  %158 = vmatpush1.bf16.msra.mxu0 %v121
  %159 = vmatprep.subr.bf16.mxu0 0
  %160 = vmatpush1.bf16.msra.mxu0 %v122
  %161 = vmatprep.subr.bf16.mxu0 0
  %162 = vmatpush1.bf16.msra.mxu0 %v123
  %163 = vmatprep.subr.bf16.mxu0 0
  %164 = vmatpush1.bf16.msra.mxu0 %v124
  %165 = vmatprep.subr.bf16.mxu0 0
  %166 = vmatpush1.bf16.msra.mxu0 %v125
  %167 = vmatprep.subr.bf16.mxu0 0
  %168 = vmatpush1.bf16.msra.mxu0 %v126
  %169 = vmatprep.subr.bf16.mxu0 0
  %170 = vmatpush1.bf16.msra.mxu0 %v127
  %171 = vmatprep.subr.bf16.mxu0 0
  %172 = vmatpush1.bf16.msra.mxu0 0
  %173 = vmatprep.subr.bf16.mxu0 0
  %174 = vmatpush1.bf16.msra.mxu0 0
  %175 = vmatprep.subr.bf16.mxu0 0
  %176 = vmatpush1.bf16.msra.mxu0 0
  %177 = vmatprep.subr.bf16.mxu0 0
  %178 = vmatpush1.bf16.msra.mxu0 0
  %179 = vmatprep.mubr.bf16.mxu0 %v142
  %180 = vmatmul.mubr.bf16.gmra.mrb[0].mxu0 %v62
  %v181 = vpop.f32.mrb[0].mxu0
  %v182 = vadd.f32 %v48, %v181
  %v183 = vpop.f32.mrb[0].mxu0
  %v184 = vpop.f32.mrb[0].mxu0
  %v185 = vadd.f32 %v48, %v184
  %v186 = vpop.f32.mrb[0].mxu0
  %187 = vmatprep.mubr.bf16.mxu0 %v145
  %188 = vmatmul.mubr.bf16.gmra.mrb[0].mxu0 %v64
  %v189 = vpop.f32.mrb[0].mxu0
  %v190 = vadd.f32 %v48, %v189
  %v191 = vpop.f32.mrb[0].mxu0
  %v192 = vpop.f32.mrb[0].mxu0
  %v193 = vadd.f32 %v48, %v192
  %v194 = vpop.f32.mrb[0].mxu0
  %195 = vdwg.mxu0
  %v196 = vmax.f32 %v182, 0.0
  %v197 = vmax.f32 %v185, 0.0
  %v198 = vmax.f32 %v190, 0.0
  %v199 = vmax.f32 %v193, 0.0
  %v200 = vpack.c.bf16 %v197, %v196
  %v201 = vpack.c.bf16 %v199, %v198
  %v204 = vunpack.c.l.b16 %v200
  %v205 = vunpack.c.h.b16 %v200
  %v206 = vunpack.c.l.b16 %v201
  %v207 = vunpack.c.h.b16 %v201
  %v208 = vpack.c.b16 %v204, %v204
  %v209 = vpack.c.b16 %v205, %v205
  %v210 = vpack.c.b16 %v206, %v206
  %v211 = vpack.c.b16 %v207, %v207
  %216 = vst [vmem:[%s3] sm:$0xf] %v208
  %217 = vst [vmem:[%s3 + $0x4] sm:$0xf] %v209
  %218 = vst [vmem:[%s3 + $0x8] sm:$0xf] %v210
  %219 = vst [vmem:[%s3 + $0xc] sm:$0xf] %v211
  // Predicated region
  $region14: #{forward.2} parent=0 // pred_check
    _
  $region15: #{forward.2} parent=0 // pred_check_branch
    %221 = sbr.rel (0) target = $region17
  $region16: #{forward.2} parent=0 // pred_region
    _
  $region17: #{forward.2} parent=0 // pred_fallthru
    _
  // Predicated region
  $region18: #{forward.2} parent=0 // pred_check
    _
  $region19: #{forward.2} parent=0 // pred_check_branch
    %223 = sbr.rel (0) target = $region21
  $region20: #{forward.2} parent=0 // pred_region
    _
  $region21: #{forward.2} parent=0 // pred_fallthru
    _

// kernel: forward.3
$region0: #{forward.3}
  #allocation0 [shape = 'u32[]', space=smem, size = 0x4, offset = 0x4, fixed_abs, tag = 'smem constant byte address 0x4 - core index']
  #allocation1 [shape = 'u32[144,128]{1,0:T(1,128)}', space=vmem, size = 0x12000, scoped, tag = 'internal scratch']
  %s0 = inlined_call_operand.vmem [shape: bf16[2,16,128], index: 0, kind: input, shape index: {}]
  %s1 = inlined_call_operand.vmem [shape: bf16[8,16], index: 1, kind: input, shape index: {}]
  %s2 = inlined_call_operand.vmem [shape: bf16[16,8], index: 2, kind: input, shape index: {}]
  %s3 = inlined_call_operand.vmem [shape: f32[8,128], index: 3, kind: input, shape index: {}]
  %s4 = inlined_call_operand.vmem [shape: bf16[128,384], index: 4, kind: input, shape index: {}]
  %s5 = inlined_call_operand.vmem [shape: bf16[3,128,128], index: 5, kind: input, shape index: {}]
  %s6 = inlined_call_operand.vmem [shape: bf16[24,128], index: 6, kind: input, shape index: {}]
  %s7 = inlined_call_operand.vmem [shape: bf16[24,128], index: 7, kind: input, shape index: {}]
  %s8 = inlined_call_operand.vmem [shape: f32[9,128], index: 8, kind: input, shape index: {}]
  %s9 = inlined_call_operand.vmem [shape: bf16[128,7], index: 9, kind: input, shape index: {}]
  %s10 = inlined_call_operand.hbm [shape: f32[2,1,7], index: 10, kind: output, shape index: {}]
  %s11 = sld [smem:[#allocation0]]
  $region73: #{forward.3} parent=0
    _
  %s13 = ssub.s32 1, %s11
  %s14 = scalar_select 0, %s13, %s11
  $region1: #{forward.3} parent=0
    #allocation2 [shape = 'u8[1024]{0}', space=vmem, size = 0x400, scoped, tag = 'output window, operand 0']
    #allocation3 [shape = 's32[2]{0}', space=sflag, size = 0x8, scoped, tag = 'scoped memory for forward.3']
    %15 = vsyncpa [#allocation3], 0
    %s16 = scalar_lea.sflag [#allocation3], 1
    %17 = vsyncpa %s16, 0
    loop: start=0, step=1, limit=4
    $region2: #{forward.3} parent=1 // loop_pre_header
      _
    $region3: #{forward.3} parent=1 // loop_header
      %s19 = sphi 0, %s23
      %p20 = scmp.ge.s32.totalorder %s19, 4
      %s29 = sphi 0, %s31
      %s32 = sphi 0, %s29
      %s33 = sphi 0, %s32
      %s49 = sphi 0, %s33
      %s53 = sphi 0, %s53
      %s55 = sphi 0, %s53
      %s56 = sphi 0, %s55
      %s70 = sphi 0, %s56
      %s74 = sphi 0, %s74
      %s76 = sphi 0, %s74
      %s77 = sphi 0, %s76
      %s91 = sphi 0, %s77
      %s95 = sphi 0, %s95
      %s97 = sphi 0, %s95
      %s98 = sphi 0, %s97
      %s112 = sphi 0, %s98
      %s116 = sphi 0, %s116
      %s118 = sphi 0, %s116
      %s119 = sphi 0, %s118
      %s133 = sphi 0, %s119
      %s137 = sphi 0, %s137
      %s139 = sphi 0, %s137
      %s140 = sphi 0, %s139
      %s154 = sphi 0, %s140
      %s158 = sphi 0, %s158
      %s160 = sphi 0, %s158
      %s161 = sphi 0, %s160
      %s175 = sphi 0, %s161
      %s179 = sphi 0, %s179
      %s181 = sphi 0, %s179
      %s182 = sphi 0, %s181
      %s196 = sphi 0, %s182
      %s200 = sphi 0, %s200
      %s202 = sphi 0, %s200
      %s203 = sphi 0, %s202
      %s217 = sphi 0, %s203
      %s221 = sphi 0, %s221
      %s223 = sphi 0, %s221
      %s224 = sphi 0, %s223
      %s238 = sphi 0, %s224
      %s244 = sphi 0, %s246
      %s247 = sphi 0, %s244
      %s248 = sphi 0, %s247
      %s264 = sphi 0, %s248
    $region4: #{forward.3} parent=1 // loop_header_branch
      %22 = sbr.rel (%p20) target = $region8
    $region5: #{forward.3} parent=1 // loop_body
      %s24 = ssub.s32 %s19, 1
      %s25 = ssub.s32 %s19, 2
      %s26 = sadd.s32 %s19, 1
      %s27 = ssub.s32 %s19, %s26
      %p28 = scmp.eq.s32.totalorder %s27, 0
      %s30 = sadd.s32 %s29, 1
      %s31 = scalar_select %p28, %s29, %s30
      %p34 = pneg %p28
      %p35 = scmp.eq.s32.totalorder %s19, 1
      %p36 = por %p34, %p35
      %p37 = scmp.ne.s32.totalorder %s29, %s32
      %p38 = scmp.eq.s32.totalorder %s19, 0
      %p39 = por %p37, %p38
      %p40 = scmp.ne.s32.totalorder %s29, %s32
      %p41 = scmp.eq.s32.totalorder %s24, 1
      %p42 = por %p40, %p41
      %p43 = scmp.ne.s32.totalorder %s32, %s33
      %p44 = scmp.eq.s32.totalorder %s24, 0
      %p45 = por %p43, %p44
      %p46 = scmp.ne.s32.totalorder %s32, %s33
      %p47 = scmp.eq.s32.totalorder %s25, 1
      %p48 = por %p46, %p47
      %p50 = scmp.ne.s32.totalorder %s33, %s49
      %p51 = scmp.eq.s32.totalorder %s25, 0
      %p52 = por %p50, %p51
      %s54 = sadd.s32 %s53, 1
      %p57 = scmp.eq.s32.totalorder %s19, 1
      %p58 = scmp.ne.s32.totalorder %s53, %s55
      %p59 = scmp.eq.s32.totalorder %s19, 0
      %p60 = por %p58, %p59
      %p61 = scmp.ne.s32.totalorder %s53, %s55
      %p62 = scmp.eq.s32.totalorder %s24, 1
      %p63 = por %p61, %p62
      %p64 = scmp.ne.s32.totalorder %s55, %s56
      %p65 = scmp.eq.s32.totalorder %s24, 0
      %p66 = por %p64, %p65
      %p67 = scmp.ne.s32.totalorder %s55, %s56
      %p68 = scmp.eq.s32.totalorder %s25, 1
      %p69 = por %p67, %p68
      %p71 = scmp.ne.s32.totalorder %s56, %s70
      %p72 = scmp.eq.s32.totalorder %s25, 0
      %p73 = por %p71, %p72
      %s75 = sadd.s32 %s74, 1
      %p78 = scmp.eq.s32.totalorder %s19, 1
      %p79 = scmp.ne.s32.totalorder %s74, %s76
      %p80 = scmp.eq.s32.totalorder %s19, 0
      %p81 = por %p79, %p80
      %p82 = scmp.ne.s32.totalorder %s74, %s76
      %p83 = scmp.eq.s32.totalorder %s24, 1
      %p84 = por %p82, %p83
      %p85 = scmp.ne.s32.totalorder %s76, %s77
      %p86 = scmp.eq.s32.totalorder %s24, 0
      %p87 = por %p85, %p86
      %p88 = scmp.ne.s32.totalorder %s76, %s77
      %p89 = scmp.eq.s32.totalorder %s25, 1
      %p90 = por %p88, %p89
      %p92 = scmp.ne.s32.totalorder %s77, %s91
      %p93 = scmp.eq.s32.totalorder %s25, 0
      %p94 = por %p92, %p93
      %s96 = sadd.s32 %s95, 1
      %p99 = scmp.eq.s32.totalorder %s19, 1
      %p100 = scmp.ne.s32.totalorder %s95, %s97
      %p101 = scmp.eq.s32.totalorder %s19, 0
      %p102 = por %p100, %p101
      %p103 = scmp.ne.s32.totalorder %s95, %s97
      %p104 = scmp.eq.s32.totalorder %s24, 1
      %p105 = por %p103, %p104
      %p106 = scmp.ne.s32.totalorder %s97, %s98
      %p107 = scmp.eq.s32.totalorder %s24, 0
      %p108 = por %p106, %p107
      %p109 = scmp.ne.s32.totalorder %s97, %s98
      %p110 = scmp.eq.s32.totalorder %s25, 1
      %p111 = por %p109, %p110
      %p113 = scmp.ne.s32.totalorder %s98, %s112
      %p114 = scmp.eq.s32.totalorder %s25, 0
      %p115 = por %p113, %p114
      %s117 = sadd.s32 %s116, 1
      %p120 = scmp.eq.s32.totalorder %s19, 1
      %p121 = scmp.ne.s32.totalorder %s116, %s118
      %p122 = scmp.eq.s32.totalorder %s19, 0
      %p123 = por %p121, %p122
      %p124 = scmp.ne.s32.totalorder %s116, %s118
      %p125 = scmp.eq.s32.totalorder %s24, 1
      %p126 = por %p124, %p125
      %p127 = scmp.ne.s32.totalorder %s118, %s119
      %p128 = scmp.eq.s32.totalorder %s24, 0
      %p129 = por %p127, %p128
      %p130 = scmp.ne.s32.totalorder %s118, %s119
      %p131 = scmp.eq.s32.totalorder %s25, 1
      %p132 = por %p130, %p131
      %p134 = scmp.ne.s32.totalorder %s119, %s133
      %p135 = scmp.eq.s32.totalorder %s25, 0
      %p136 = por %p134, %p135
      %s138 = sadd.s32 %s137, 1
      %p141 = scmp.eq.s32.totalorder %s19, 1
      %p142 = scmp.ne.s32.totalorder %s137, %s139
      %p143 = scmp.eq.s32.totalorder %s19, 0
      %p144 = por %p142, %p143
      %p145 = scmp.ne.s32.totalorder %s137, %s139
      %p146 = scmp.eq.s32.totalorder %s24, 1
      %p147 = por %p145, %p146
      %p148 = scmp.ne.s32.totalorder %s139, %s140
      %p149 = scmp.eq.s32.totalorder %s24, 0
      %p150 = por %p148, %p149
      %p151 = scmp.ne.s32.totalorder %s139, %s140
      %p152 = scmp.eq.s32.totalorder %s25, 1
      %p153 = por %p151, %p152
      %p155 = scmp.ne.s32.totalorder %s140, %s154
      %p156 = scmp.eq.s32.totalorder %s25, 0
      %p157 = por %p155, %p156
      %s159 = sadd.s32 %s158, 1
      %p162 = scmp.eq.s32.totalorder %s19, 1
      %p163 = scmp.ne.s32.totalorder %s158, %s160
      %p164 = scmp.eq.s32.totalorder %s19, 0
      %p165 = por %p163, %p164
      %p166 = scmp.ne.s32.totalorder %s158, %s160
      %p167 = scmp.eq.s32.totalorder %s24, 1
      %p168 = por %p166, %p167
      %p169 = scmp.ne.s32.totalorder %s160, %s161
      %p170 = scmp.eq.s32.totalorder %s24, 0
      %p171 = por %p169, %p170
      %p172 = scmp.ne.s32.totalorder %s160, %s161
      %p173 = scmp.eq.s32.totalorder %s25, 1
      %p174 = por %p172, %p173
      %p176 = scmp.ne.s32.totalorder %s161, %s175
      %p177 = scmp.eq.s32.totalorder %s25, 0
      %p178 = por %p176, %p177
      %s180 = sadd.s32 %s179, 1
      %p183 = scmp.eq.s32.totalorder %s19, 1
      %p184 = scmp.ne.s32.totalorder %s179, %s181
      %p185 = scmp.eq.s32.totalorder %s19, 0
      %p186 = por %p184, %p185
      %p187 = scmp.ne.s32.totalorder %s179, %s181
      %p188 = scmp.eq.s32.totalorder %s24, 1
      %p189 = por %p187, %p188
      %p190 = scmp.ne.s32.totalorder %s181, %s182
      %p191 = scmp.eq.s32.totalorder %s24, 0
      %p192 = por %p190, %p191
      %p193 = scmp.ne.s32.totalorder %s181, %s182
      %p194 = scmp.eq.s32.totalorder %s25, 1
      %p195 = por %p193, %p194
      %p197 = scmp.ne.s32.totalorder %s182, %s196
      %p198 = scmp.eq.s32.totalorder %s25, 0
      %p199 = por %p197, %p198
      %s201 = sadd.s32 %s200, 1
      %p204 = scmp.eq.s32.totalorder %s19, 1
      %p205 = scmp.ne.s32.totalorder %s200, %s202
      %p206 = scmp.eq.s32.totalorder %s19, 0
      %p207 = por %p205, %p206
      %p208 = scmp.ne.s32.totalorder %s200, %s202
      %p209 = scmp.eq.s32.totalorder %s24, 1
      %p210 = por %p208, %p209
      %p211 = scmp.ne.s32.totalorder %s202, %s203
      %p212 = scmp.eq.s32.totalorder %s24, 0
      %p213 = por %p211, %p212
      %p214 = scmp.ne.s32.totalorder %s202, %s203
      %p215 = scmp.eq.s32.totalorder %s25, 1
      %p216 = por %p214, %p215
      %p218 = scmp.ne.s32.totalorder %s203, %s217
      %p219 = scmp.eq.s32.totalorder %s25, 0
      %p220 = por %p218, %p219
      %s222 = sadd.s32 %s221, 1
      %p225 = scmp.eq.s32.totalorder %s19, 1
      %p226 = scmp.ne.s32.totalorder %s221, %s223
      %p227 = scmp.eq.s32.totalorder %s19, 0
      %p228 = por %p226, %p227
      %p229 = scmp.ne.s32.totalorder %s221, %s223
      %p230 = scmp.eq.s32.totalorder %s24, 1
      %p231 = por %p229, %p230
      %p232 = scmp.ne.s32.totalorder %s223, %s224
      %p233 = scmp.eq.s32.totalorder %s24, 0
      %p234 = por %p232, %p233
      %p235 = scmp.ne.s32.totalorder %s223, %s224
      %p236 = scmp.eq.s32.totalorder %s25, 1
      %p237 = por %p235, %p236
      %p239 = scmp.ne.s32.totalorder %s224, %s238
      %p240 = scmp.eq.s32.totalorder %s25, 0
      %p241 = por %p239, %p240
      %s242 = ssub.s32 %s19, %s26
      %p243 = scmp.eq.s32.totalorder %s242, 0
      %s245 = sadd.s32 %s244, 1
      %s246 = scalar_select %p243, %s244, %s245
      %p249 = pneg %p243
      %p250 = scmp.eq.s32.totalorder %s19, 1
      %p251 = por %p249, %p250
      %p252 = scmp.ne.s32.totalorder %s244, %s247
      %p253 = scmp.eq.s32.totalorder %s19, 0
      %p254 = por %p252, %p253
      %p255 = scmp.ne.s32.totalorder %s244, %s247
      %p256 = scmp.eq.s32.totalorder %s24, 1
      %p257 = por %p255, %p256
      %p258 = scmp.ne.s32.totalorder %s247, %s248
      %p259 = scmp.eq.s32.totalorder %s24, 0
      %p260 = por %p258, %p259
      %p261 = scmp.ne.s32.totalorder %s247, %s248
      %p262 = scmp.eq.s32.totalorder %s25, 1
      %p263 = por %p261, %p262
      %p265 = scmp.ne.s32.totalorder %s248, %s264
      %p266 = scmp.eq.s32.totalorder %s25, 0
      %p267 = por %p265, %p266
      %p268 = scmp.le.s32.totalorder 1, %s19
      %p269 = scmp.lt.s32.totalorder %s19, 3
      %p270 = pnand %p268, %p269
      %p271 = pneg %p270
      // Predicated region
      $region9: #{forward.3} parent=5 // pred_check
        _
      $region10: #{forward.3} parent=5 // pred_check_branch
        %273 = sbr.rel (%p270) target = $region12
      $region11: #{forward.3} parent=5 // pred_region
        %s274 = ssub.s32 %s19, 1
        // Predicated region
        $region13: #{forward.3} parent=11 // pred_check
          %p275 = pneg %p66
        $region14: #{forward.3} parent=11 // pred_check_branch
          %277 = sbr.rel (%p275) target = $region16
        $region15: #{forward.3} parent=11 // pred_region
          _
        $region16: #{forward.3} parent=11 // pred_fallthru
          _
        // Predicated region
        $region17: #{forward.3} parent=11 // pred_check
          %p278 = pneg %p87
        $region18: #{forward.3} parent=11 // pred_check_branch
          %280 = sbr.rel (%p278) target = $region20
        $region19: #{forward.3} parent=11 // pred_region
          _
        $region20: #{forward.3} parent=11 // pred_fallthru
          _
        // Predicated region
        $region21: #{forward.3} parent=11 // pred_check
          %p281 = pneg %p108
        $region22: #{forward.3} parent=11 // pred_check_branch
          %283 = sbr.rel (%p281) target = $region24
        $region23: #{forward.3} parent=11 // pred_region
          _
        $region24: #{forward.3} parent=11 // pred_fallthru
          _
        // Predicated region
        $region25: #{forward.3} parent=11 // pred_check
          %p284 = pneg %p129
        $region26: #{forward.3} parent=11 // pred_check_branch
          %286 = sbr.rel (%p284) target = $region28
        $region27: #{forward.3} parent=11 // pred_region
          _
        $region28: #{forward.3} parent=11 // pred_fallthru
          _
        // Predicated region
        $region29: #{forward.3} parent=11 // pred_check
          %p287 = pneg %p150
        $region30: #{forward.3} parent=11 // pred_check_branch
          %289 = sbr.rel (%p287) target = $region32
        $region31: #{forward.3} parent=11 // pred_region
          _
        $region32: #{forward.3} parent=11 // pred_fallthru
          _
        // Predicated region
        $region33: #{forward.3} parent=11 // pred_check
          %p290 = pneg %p171
        $region34: #{forward.3} parent=11 // pred_check_branch
          %292 = sbr.rel (%p290) target = $region36
        $region35: #{forward.3} parent=11 // pred_region
          _
        $region36: #{forward.3} parent=11 // pred_fallthru
          _
        // Predicated region
        $region37: #{forward.3} parent=11 // pred_check
          %p293 = pneg %p192
        $region38: #{forward.3} parent=11 // pred_check_branch
          %295 = sbr.rel (%p293) target = $region40
        $region39: #{forward.3} parent=11 // pred_region
          _
        $region40: #{forward.3} parent=11 // pred_fallthru
          _
        // Predicated region
        $region41: #{forward.3} parent=11 // pred_check
          %p296 = pneg %p213
        $region42: #{forward.3} parent=11 // pred_check_branch
          %298 = sbr.rel (%p296) target = $region44
        $region43: #{forward.3} parent=11 // pred_region
          _
        $region44: #{forward.3} parent=11 // pred_fallthru
          _
        // Predicated region
        $region45: #{forward.3} parent=11 // pred_check
          %p299 = pneg %p234
        $region46: #{forward.3} parent=11 // pred_check_branch
          %301 = sbr.rel (%p299) target = $region48
        $region47: #{forward.3} parent=11 // pred_region
          _
        $region48: #{forward.3} parent=11 // pred_fallthru
          _
      $region12: #{forward.3} parent=5 // pred_fallthru
        _
      %p302 = scmp.lt.s32.totalorder %s19, 2
      // Predicated region
      $region49: #{forward.3} parent=5 // pred_check
        %p303 = pneg %p302
      $region50: #{forward.3} parent=5 // pred_check_branch
        %305 = sbr.rel (%p303) target = $region52
      $region51: #{forward.3} parent=5 // pred_region
        // Predicated region
        $region53: #{forward.3} parent=51 // pred_check
          %p306 = pneg %p39
        $region54: #{forward.3} parent=51 // pred_check_branch
          %308 = sbr.rel (%p306) target = $region56
        $region55: #{forward.3} parent=51 // pred_region
          %p309 = scmp.lt.s32.totalorder %s19, 1
          %s310 = scalar_select %p309, %s19, 1
          %s311 = smul.addr %s310, 2
          %s312 = smul.addr %s311, 4
          %s313 = scalar_lea.vmem %s0, %s312
        $region56: #{forward.3} parent=51 // pred_fallthru
          _
      $region52: #{forward.3} parent=5 // pred_fallthru
        _
      %p314 = scmp.le.s32.totalorder 1, %s19
      %p315 = scmp.lt.s32.totalorder %s19, 3
      %p316 = pnand %p314, %p315
      %p317 = pneg %p316
      // Predicated region
      $region57: #{forward.3} parent=5 // pred_check
        _
      $region58: #{forward.3} parent=5 // pred_check_branch
        %319 = sbr.rel (%p316) target = $region60
      $region59: #{forward.3} parent=5 // pred_region
        %s320 = ssub.s32 %s19, 1
        %p321 = scmp.lt.s32.totalorder %s24, 1
        %s322 = scalar_select %p321, %s24, 1
        %s323 = smul.addr %s322, 2
        %s324 = smul.addr %s323, 4
        %s325 = scalar_lea.vmem %s0, %s324
        %p326 = pneg %p45
        %p327 = pneg %p42
        %p328 = pneg %p66
        %p329 = pneg %p63
        %p330 = pneg %p87
        %p331 = pneg %p84
        %p332 = pneg %p108
        %p333 = pneg %p105
        %p334 = pneg %p129
        %p335 = pneg %p126
        %p336 = pneg %p150
        %p337 = pneg %p147
        %p338 = pneg %p171
        %p339 = pneg %p168
        %p340 = pneg %p192
        %p341 = pneg %p189
        %p342 = pneg %p213
        %p343 = pneg %p210
        %p344 = pneg %p234
        %p345 = pneg %p231
        %p346 = pneg %p260
        %p347 = pneg %p257
        %s348 = sand.u32 %s247, 1
        %s349 = scalar_lea.sflag [#allocation3], %s348
        %s350 = sand.u32 %s247, 1
        %s351 = scalar_lea.vmem [#allocation2], %s350
        %p352 = scmp.lt.s32.totalorder %s24, 1
        %s353 = scalar_select %p352, %s24, 1
        %s354 = smul.addr %s353, 2
        %s355 = smul.addr %s354, 4
        %s356 = scalar_lea.vmem %s0, %s355
        %v358 = vld [vmem:[%s356] sm:$0xf]
        %v359 = vld [vmem:[%s356 + $0x4] sm:$0xf]
        %v360 = vld [vmem:[%s4] sm:$0xff]
        %v361 = vld [vmem:[%s4 + $0x8] sm:$0xf]
        %v362 = vld [vmem:[%s4 + $0xc] sm:$0xff]
        %v363 = vld [vmem:[%s4 + $0x14] sm:$0xf]
        %v364 = vld [vmem:[%s4 + $0x18] sm:$0xff]
        %v365 = vld [vmem:[%s4 + $0x20] sm:$0xf]
        %v366 = vld [vmem:[%s4 + $0x24] sm:$0xff]
        %v367 = vld [vmem:[%s4 + $0x2c] sm:$0xf]
        %v368 = vld [vmem:[%s4 + $0x30] sm:$0xff]
        %v369 = vld [vmem:[%s4 + $0x38] sm:$0xf]
        %v370 = vld [vmem:[%s4 + $0x3c] sm:$0xff]
        %v371 = vld [vmem:[%s4 + $0x44] sm:$0xf]
        %v372 = vld [vmem:[%s4 + $0x48] sm:$0xff]
        %v373 = vld [vmem:[%s4 + $0x50] sm:$0xf]
        %v374 = vld [vmem:[%s4 + $0x54] sm:$0xff]
        %v375 = vld [vmem:[%s4 + $0x5c] sm:$0xf]
        %v376 = vld [vmem:[%s4 + $0x60] sm:$0xff]
        %v377 = vld [vmem:[%s4 + $0x68] sm:$0xf]
        %v378 = vld [vmem:[%s4 + $0x6c] sm:$0xff]
        %v379 = vld [vmem:[%s4 + $0x74] sm:$0xf]
        %v380 = vld [vmem:[%s4 + $0x78] sm:$0xff]
        %v381 = vld [vmem:[%s4 + $0x80] sm:$0xf]
        %v382 = vld [vmem:[%s4 + $0x84] sm:$0xff]
        %v383 = vld [vmem:[%s4 + $0x8c] sm:$0xf]
        %v384 = vld [vmem:[%s4 + $0x90] sm:$0xff]
        %v385 = vld [vmem:[%s4 + $0x98] sm:$0xf]
        %v386 = vld [vmem:[%s4 + $0x9c] sm:$0xff]
        %v387 = vld [vmem:[%s4 + $0xa4] sm:$0xf]
        %v388 = vld [vmem:[%s4 + $0xa8] sm:$0xff]
        %v389 = vld [vmem:[%s4 + $0xb0] sm:$0xf]
        %v390 = vld [vmem:[%s4 + $0xb4] sm:$0xff]
        %v391 = vld [vmem:[%s4 + $0xbc] sm:$0xf]
        %v394 = vunpack.c.l.b16 %v358
        %v395 = vunpack.c.l.b16 %v359
        %v396 = vpack.c.b16 %v395, %v394
        %v430 = vunpack.c.l.b16 %v360
        %v431 = vunpack.c.h.b16 %v360
        %v432 = vunpack.c.l.b16 %v361
        %v433 = vunpack.c.l.b16 %v362
        %v434 = vunpack.c.h.b16 %v362
        %v435 = vunpack.c.l.b16 %v363
        %v436 = vunpack.c.l.b16 %v364
        %v437 = vunpack.c.h.b16 %v364
        %v438 = vunpack.c.l.b16 %v365
        %v439 = vunpack.c.l.b16 %v366
        %v440 = vunpack.c.h.b16 %v366
        %v441 = vunpack.c.l.b16 %v367
        %v442 = vunpack.c.l.b16 %v368
        %v443 = vunpack.c.h.b16 %v368
        %v444 = vunpack.c.l.b16 %v369
        %v445 = vunpack.c.l.b16 %v370
        %v446 = vunpack.c.h.b16 %v370
        %v447 = vunpack.c.l.b16 %v371
        %v448 = vunpack.c.l.b16 %v372
        %v449 = vunpack.c.h.b16 %v372
        %v450 = vunpack.c.l.b16 %v373
        %v451 = vunpack.c.l.b16 %v374
        %v452 = vunpack.c.h.b16 %v374
        %v453 = vunpack.c.l.b16 %v375
        %v454 = vunpack.c.l.b16 %v376
        %v455 = vunpack.c.h.b16 %v376
        %v456 = vunpack.c.l.b16 %v377
        %v457 = vunpack.c.l.b16 %v378
        %v458 = vunpack.c.h.b16 %v378
        %v459 = vunpack.c.l.b16 %v379
        %v460 = vunpack.c.l.b16 %v380
        %v461 = vunpack.c.h.b16 %v380
        %v462 = vunpack.c.l.b16 %v381
        %v463 = vunpack.c.l.b16 %v382
        %v464 = vunpack.c.h.b16 %v382
        %v465 = vunpack.c.l.b16 %v383
        %v466 = vunpack.c.l.b16 %v384
        %v467 = vunpack.c.h.b16 %v384
        %v468 = vunpack.c.l.b16 %v385
        %v469 = vunpack.c.l.b16 %v386
        %v470 = vunpack.c.h.b16 %v386
        %v471 = vunpack.c.l.b16 %v387
        %v472 = vunpack.c.l.b16 %v388
        %v473 = vunpack.c.h.b16 %v388
        %v474 = vunpack.c.l.b16 %v389
        %v475 = vunpack.c.l.b16 %v390
        %v476 = vunpack.c.h.b16 %v390
        %v477 = vunpack.c.l.b16 %v391
        %v478 = vpack.c.b16 %v433, %v430
        %v479 = vpack.c.b16 %v434, %v431
        %v480 = vpack.c.b16 %v435, %v432
        %v481 = vpack.c.b16 %v439, %v436
        %v482 = vpack.c.b16 %v440, %v437
        %v483 = vpack.c.b16 %v441, %v438
        %v484 = vpack.c.b16 %v445, %v442
        %v485 = vpack.c.b16 %v446, %v443
        %v486 = vpack.c.b16 %v447, %v444
        %v487 = vpack.c.b16 %v451, %v448
        %v488 = vpack.c.b16 %v452, %v449
        %v489 = vpack.c.b16 %v453, %v450
        %v490 = vpack.c.b16 %v457, %v454
        %v491 = vpack.c.b16 %v458, %v455
        %v492 = vpack.c.b16 %v459, %v456
        %v493 = vpack.c.b16 %v463, %v460
        %v494 = vpack.c.b16 %v464, %v461
        %v495 = vpack.c.b16 %v465, %v462
        %v496 = vpack.c.b16 %v469, %v466
        %v497 = vpack.c.b16 %v470, %v467
        %v498 = vpack.c.b16 %v471, %v468
        %v499 = vpack.c.b16 %v475, %v472
        %v500 = vpack.c.b16 %v476, %v473
        %v501 = vpack.c.b16 %v477, %v474
        %526 = vmatprep.subr.bf16.mxu0 %v479
        %527 = vmatpush1.bf16.msra.mxu0 %v478
        %528 = vmatprep.subr.bf16.mxu0 %v482
        %529 = vmatpush1.bf16.msra.mxu0 %v481
        %530 = vmatprep.subr.bf16.mxu0 %v485
        %531 = vmatpush1.bf16.msra.mxu0 %v484
        %532 = vmatprep.subr.bf16.mxu0 %v488
        %533 = vmatpush1.bf16.msra.mxu0 %v487
        %534 = vmatprep.subr.bf16.mxu0 %v491
        %535 = vmatpush1.bf16.msra.mxu0 %v490
        %536 = vmatprep.subr.bf16.mxu0 %v494
        %537 = vmatpush1.bf16.msra.mxu0 %v493
        %538 = vmatprep.subr.bf16.mxu0 %v497
        %539 = vmatpush1.bf16.msra.mxu0 %v496
        %540 = vmatprep.subr.bf16.mxu0 %v500
        %541 = vmatpush1.bf16.msra.mxu0 %v499
        %542 = vmatprep.subr.bf16.mxu0 0
        %543 = vmatpush1.bf16.msra.mxu0 0
        %544 = vmatprep.subr.bf16.mxu0 0
        %545 = vmatpush1.bf16.msra.mxu0 0
        %546 = vmatprep.subr.bf16.mxu0 0
        %547 = vmatpush1.bf16.msra.mxu0 0
        %548 = vmatprep.subr.bf16.mxu0 0
        %549 = vmatpush1.bf16.msra.mxu0 0
        %550 = vmatprep.subr.bf16.mxu0 0
        %551 = vmatpush1.bf16.msra.mxu0 0
        %552 = vmatprep.subr.bf16.mxu0 0
        %553 = vmatpush1.bf16.msra.mxu0 0
        %554 = vmatprep.subr.bf16.mxu0 0
        %555 = vmatpush1.bf16.msra.mxu0 0
        %556 = vmatprep.subr.bf16.mxu0 0
        %557 = vmatpush1.bf16.msra.mxu0 0
        %558 = vmatprep.mubr.bf16.mxu0 0
        %559 = vmatmul.mubr.bf16.gmra.mrb[0].mxu0 %v396
        %v560 = vpop.f32.mrb[0].mxu0
        %v561 = vadd.f32 0.0, %v560
        %v562 = vpop.f32.mrb[0].mxu0
        %v563 = vadd.f32 0.0, %v562
        %v564 = vpop.f32.mrb[0].mxu0
        %v565 = vadd.f32 0.0, %v564
        %v566 = vpop.f32.mrb[0].mxu0
        %v567 = vadd.f32 0.0, %v566
        %568 = vdwg.mxu0
        %569 = vmatprep.subr.bf16.mxu0 0
        %570 = vmatpush1.bf16.msra.mxu0 %v480
        %571 = vmatprep.subr.bf16.mxu0 0
        %572 = vmatpush1.bf16.msra.mxu0 %v483
        %573 = vmatprep.subr.bf16.mxu0 0
        %574 = vmatpush1.bf16.msra.mxu0 %v486
        %575 = vmatprep.subr.bf16.mxu0 0
        %576 = vmatpush1.bf16.msra.mxu0 %v489
        %577 = vmatprep.subr.bf16.mxu0 0
        %578 = vmatpush1.bf16.msra.mxu0 %v492
        %579 = vmatprep.subr.bf16.mxu0 0
        %580 = vmatpush1.bf16.msra.mxu0 %v495
        %581 = vmatprep.subr.bf16.mxu0 0
        %582 = vmatpush1.bf16.msra.mxu0 %v498
        %583 = vmatprep.subr.bf16.mxu0 0
        %584 = vmatpush1.bf16.msra.mxu0 %v501
        %585 = vmatprep.subr.bf16.mxu0 0
        %586 = vmatpush1.bf16.msra.mxu0 0
        %587 = vmatprep.subr.bf16.mxu0 0
        %588 = vmatpush1.bf16.msra.mxu0 0
        %589 = vmatprep.subr.bf16.mxu0 0
        %590 = vmatpush1.bf16.msra.mxu0 0
        %591 = vmatprep.subr.bf16.mxu0 0
        %592 = vmatpush1.bf16.msra.mxu0 0
        %593 = vmatprep.subr.bf16.mxu0 0
        %594 = vmatpush1.bf16.msra.mxu0 0
        %595 = vmatprep.subr.bf16.mxu0 0
        %596 = vmatpush1.bf16.msra.mxu0 0
        %597 = vmatprep.subr.bf16.mxu0 0
        %598 = vmatpush1.bf16.msra.mxu0 0
        %599 = vmatprep.subr.bf16.mxu0 0
        %600 = vmatpush1.bf16.msra.mxu0 0
        %601 = vmatprep.mubr.bf16.mxu0 0
        %602 = vmatmul.mubr.bf16.gmra.mrb[0].mxu0 %v396
        %v603 = vpop.f32.mrb[0].mxu0
        %v604 = vadd.f32 0.0, %v603
        %v605 = vpop.f32.mrb[0].mxu0
        %v606 = vpop.f32.mrb[0].mxu0
        %v607 = vadd.f32 0.0, %v606
        %v608 = vpop.f32.mrb[0].mxu0
        %609 = vdwg.mxu0
        %v610 = vpack.c.bf16 %v565, %v561
        %v611 = vpack.c.bf16 %v567, %v563
        %v612 = vpack.c.bf16 %v607, %v604
        %613 = vmatprep.subr.bf16.mxu0 0
        %614 = vmatpush1.bf16.xpose.msra.mxu0 %v611
        %615 = vmatprep.subr.bf16.mxu0 0
        %616 = vmatpush1.bf16.xpose.msra.mxu0 0
        %617 = vmatprep.subr.bf16.mxu0 0
        %618 = vmatpush1.bf16.xpose.msra.mxu0 0
        %619 = vmatprep.subr.bf16.mxu0 0
        %620 = vmatpush1.bf16.xpose.msra.mxu0 0
        %621 = vmatprep.subr.bf16.mxu0 0
        %622 = vmatpush1.bf16.xpose.msra.mxu0 0
        %623 = vmatprep.subr.bf16.mxu0 0
        %624 = vmatpush1.bf16.xpose.msra.mxu0 0
        %625 = vmatprep.subr.bf16.mxu0 0
        %626 = vmatpush1.bf16.xpose.msra.mxu0 0
        %627 = vmatprep.subr.bf16.mxu0 0
        %628 = vmatpush1.bf16.xpose.msra.mxu0 0
        %629 = vmatprep.subr.bf16.mxu0 0
        %630 = vmatpush1.bf16.xpose.msra.mxu0 0
        %631 = vmatprep.subr.bf16.mxu0 0
        %632 = vmatpush1.bf16.xpose.msra.mxu0 0
        %633 = vmatprep.subr.bf16.mxu0 0
        %634 = vmatpush1.bf16.xpose.msra.mxu0 0
        %635 = vmatprep.subr.bf16.mxu0 0
        %636 = vmatpush1.bf16.xpose.msra.mxu0 0
        %637 = vmatprep.subr.bf16.mxu0 0
        %638 = vmatpush1.bf16.xpose.msra.mxu0 0
        %639 = vmatprep.subr.bf16.mxu0 0
        %640 = vmatpush1.bf16.xpose.msra.mxu0 0
        %641 = vmatprep.subr.bf16.mxu0 0
        %642 = vmatpush1.bf16.xpose.msra.mxu0 0
        %643 = vmatprep.subr.bf16.mxu0 0
        %644 = vmatpush1.bf16.xpose.msra.mxu0 0
        %645 = vmatprep.mubr.bf16.mxu0 0
        %646 = vmatmul.mubr.bf16.gmra.mrb[0].mxu0 %v610
        %v647 = vpop.f32.mrb[0].mxu0
        %v648 = vadd.f32 0.0, %v647
        %v649 = vpop.f32.mrb[0].mxu0
        %v650 = vpop.f32.mrb[0].mxu0
        %v651 = vadd.f32 0.0, %v650
        %v652 = vpop.f32.mrb[0].mxu0
        %653 = vdwg.mxu0
        %v654 = vmul.f32 %v648, 0.088388346
        %v655 = vmul.f32 %v651, 0.088388346
        %vm656 = vcmask 130048
        %v657 = vsel %vm656, %v654, -inf
        %658 = vmax.xlane.f32.xlu0 %v657
        %v659 = vpop.xlane.xlu0 %658
        %v660 = vsel %vm656, %v655, -inf
        %661 = vmax.xlane.f32.xlu0 %v660
        %v662 = vpop.xlane.xlu0 %661
        %v663 = vsub.f32 %v654, %v659
        %v664 = vsub.f32 %v655, %v662
        %v665 = vmul.f32 %v663, 1.442695
        %v666 = vpow.pop %v665
        %v667 = vmul.f32 %v664, 1.442695
        %v668 = vpow.pop %v667
        %v669 = vsel %vm656, %v666, 0.0
        %670 = vadd.xlane.f32.xlu0 %v669
        %v671 = vpop.xlane.xlu0 %670
        %v672 = vsel %vm656, %v668, 0.0
        %673 = vadd.xlane.f32.xlu0 %v672
        %v674 = vpop.xlane.xlu0 %673
        %v675 = vrcp.pop %v671
        %v676 = vrcp.pop %v674
        %v677 = vmul.f32 %v666, %v675
        %v678 = vmul.f32 %v668, %v676
        %v679 = vpack.c.bf16 %v678, %v677
        %v680 = vunpack.c.l.bf16 %v358
        %v681 = vunpack.c.l.bf16 %v359
        %v683 = vsel %vm656, %v679, 0
        %685 = vmatprep.subr.bf16.mxu0 0
        %686 = vmatpush1.bf16.msra.mxu0 %v612
        %687 = vmatprep.subr.bf16.mxu0 0
        %688 = vmatpush1.bf16.msra.mxu0 0
        %689 = vmatprep.subr.bf16.mxu0 0
        %690 = vmatpush1.bf16.msra.mxu0 0
        %691 = vmatprep.subr.bf16.mxu0 0
        %692 = vmatpush1.bf16.msra.mxu0 0
        %693 = vmatprep.subr.bf16.mxu0 0
        %694 = vmatpush1.bf16.msra.mxu0 0
        %695 = vmatprep.subr.bf16.mxu0 0
        %696 = vmatpush1.bf16.msra.mxu0 0
        %697 = vmatprep.subr.bf16.mxu0 0
        %698 = vmatpush1.bf16.msra.mxu0 0
        %699 = vmatprep.subr.bf16.mxu0 0
        %700 = vmatpush1.bf16.msra.mxu0 0
        %701 = vmatprep.subr.bf16.mxu0 0
        %702 = vmatpush1.bf16.msra.mxu0 0
        %703 = vmatprep.subr.bf16.mxu0 0
        %704 = vmatpush1.bf16.msra.mxu0 0
        %705 = vmatprep.subr.bf16.mxu0 0
        %706 = vmatpush1.bf16.msra.mxu0 0
        %707 = vmatprep.subr.bf16.mxu0 0
        %708 = vmatpush1.bf16.msra.mxu0 0
        %709 = vmatprep.subr.bf16.mxu0 0
        %710 = vmatpush1.bf16.msra.mxu0 0
        %711 = vmatprep.subr.bf16.mxu0 0
        %712 = vmatpush1.bf16.msra.mxu0 0
        %713 = vmatprep.subr.bf16.mxu0 0
        %714 = vmatpush1.bf16.msra.mxu0 0
        %715 = vmatprep.subr.bf16.mxu0 0
        %716 = vmatpush1.bf16.msra.mxu0 0
        %717 = vmatprep.mubr.bf16.mxu0 0
        %718 = vmatmul.mubr.bf16.gmra.mrb[0].mxu0 %v683
        %v719 = vpop.f32.mrb[0].mxu0
        %v720 = vadd.f32 %v680, %v719
        %v721 = vpop.f32.mrb[0].mxu0
        %v722 = vpop.f32.mrb[0].mxu0
        %v723 = vadd.f32 %v681, %v722
        %v724 = vpop.f32.mrb[0].mxu0
        %725 = vdwg.mxu0
        %v726 = vadd.f32 %v720, %v723
        %v727 = vrot.slane %v726, 4
        %v728 = vadd.f32 %v726, %v727
        %v729 = vrot.slane %v728, 2
        %v730 = vadd.f32 %v728, %v729
        %v731 = vrot.slane %v730, 1
        %v732 = vadd.f32 %v730, %v731
        %v733 = vrcp.pop 16.0
        %v734 = vmul.f32 %v732, %v733
        %v735 = vld [vmem:[%s6] sm:$0xf]
        %v736 = vld [vmem:[%s7] sm:$0xf]
        %v737 = vld [vmem:[%s8] sm:$0x1]
        %v738 = vld [vmem:[%s8 + $0x1] sm:$0x1]
        %v739 = vpack.c.bf16 %v734, %v734
        %740 = vmatprep.subr.bf16.mxu0 0
        %741 = vmatpush1.bf16.xpose.msra.mxu0 %v735
        %742 = vmatprep.subr.bf16.mxu0 0
        %743 = vmatpush1.bf16.xpose.msra.mxu0 0
        %744 = vmatprep.subr.bf16.mxu0 0
        %745 = vmatpush1.bf16.xpose.msra.mxu0 0
        %746 = vmatprep.subr.bf16.mxu0 0
        %747 = vmatpush1.bf16.xpose.msra.mxu0 0
        %748 = vmatprep.subr.bf16.mxu0 0
        %749 = vmatpush1.bf16.xpose.msra.mxu0 0
        %750 = vmatprep.subr.bf16.mxu0 0
        %751 = vmatpush1.bf16.xpose.msra.mxu0 0
        %752 = vmatprep.subr.bf16.mxu0 0
        %753 = vmatpush1.bf16.xpose.msra.mxu0 0
        %754 = vmatprep.subr.bf16.mxu0 0
        %755 = vmatpush1.bf16.xpose.msra.mxu0 0
        %756 = vmatprep.subr.bf16.mxu0 0
        %757 = vmatpush1.bf16.xpose.msra.mxu0 0
        %758 = vmatprep.subr.bf16.mxu0 0
        %759 = vmatpush1.bf16.xpose.msra.mxu0 0
        %760 = vmatprep.subr.bf16.mxu0 0
        %761 = vmatpush1.bf16.xpose.msra.mxu0 0
        %762 = vmatprep.subr.bf16.mxu0 0
        %763 = vmatpush1.bf16.xpose.msra.mxu0 0
        %764 = vmatprep.subr.bf16.mxu0 0
        %765 = vmatpush1.bf16.xpose.msra.mxu0 0
        %766 = vmatprep.subr.bf16.mxu0 0
        %767 = vmatpush1.bf16.xpose.msra.mxu0 0
        %768 = vmatprep.subr.bf16.mxu0 0
        %769 = vmatpush1.bf16.xpose.msra.mxu0 0
        %770 = vmatprep.subr.bf16.mxu0 0
        %771 = vmatpush1.bf16.xpose.msra.mxu0 0
        %772 = vmatprep.mubr.bf16.mxu0 0
        %773 = vmatmul.mubr.bf16.gmra.mrb[0].mxu0 %v739
        %v774 = vpop.f32.mrb[0].mxu0
        %v775 = vadd.f32 %v737, %v774
        %v776 = vpop.f32.mrb[0].mxu0
        %v777 = vpop.f32.mrb[0].mxu0
        %v778 = vpop.f32.mrb[0].mxu0
        %779 = vdwg.mxu0
        %v780 = vmax.f32 %v775, 0.0
        %v781 = vpack.c.bf16 %v780, %v780
        %vm782 = vcmask 64512
        %v784 = vsel %vm782, %v781, 0
        %vm786 = vcmask 1043456
        %v788 = vsel %vm786, %v736, 0
        %790 = vmatprep.subr.bf16.mxu0 0
        %791 = vmatpush1.bf16.msra.mxu0 %v788
        %792 = vmatprep.subr.bf16.mxu0 0
        %793 = vmatpush1.bf16.msra.mxu0 0
        %794 = vmatprep.subr.bf16.mxu0 0
        %795 = vmatpush1.bf16.msra.mxu0 0
        %796 = vmatprep.subr.bf16.mxu0 0
        %797 = vmatpush1.bf16.msra.mxu0 0
        %798 = vmatprep.subr.bf16.mxu0 0
        %799 = vmatpush1.bf16.msra.mxu0 0
        %800 = vmatprep.subr.bf16.mxu0 0
        %801 = vmatpush1.bf16.msra.mxu0 0
        %802 = vmatprep.subr.bf16.mxu0 0
        %803 = vmatpush1.bf16.msra.mxu0 0
        %804 = vmatprep.subr.bf16.mxu0 0
        %805 = vmatpush1.bf16.msra.mxu0 0
        %806 = vmatprep.subr.bf16.mxu0 0
        %807 = vmatpush1.bf16.msra.mxu0 0
        %808 = vmatprep.subr.bf16.mxu0 0
        %809 = vmatpush1.bf16.msra.mxu0 0
        %810 = vmatprep.subr.bf16.mxu0 0
        %811 = vmatpush1.bf16.msra.mxu0 0
        %812 = vmatprep.subr.bf16.mxu0 0
        %813 = vmatpush1.bf16.msra.mxu0 0
        %814 = vmatprep.subr.bf16.mxu0 0
        %815 = vmatpush1.bf16.msra.mxu0 0
        %816 = vmatprep.subr.bf16.mxu0 0
        %817 = vmatpush1.bf16.msra.mxu0 0
        %818 = vmatprep.subr.bf16.mxu0 0
        %819 = vmatpush1.bf16.msra.mxu0 0
        %820 = vmatprep.subr.bf16.mxu0 0
        %821 = vmatpush1.bf16.msra.mxu0 0
        %822 = vmatprep.mubr.bf16.mxu0 0
        %823 = vmatmul.mubr.bf16.gmra.mrb[0].mxu0 %v784
        %v824 = vpop.f32.mrb[0].mxu0
        %v825 = vadd.f32 %v738, %v824
        %v826 = vpop.f32.mrb[0].mxu0
        %v827 = vpop.f32.mrb[0].mxu0
        %v828 = vpop.f32.mrb[0].mxu0
        %829 = vdwg.mxu0
        %v830 = vxor.u32 %v825, 2147483648
        %v831 = vmul.f32 %v830, 1.442695
        %v832 = vpow.pop %v831
        %v833 = vadd.f32 %v832, 1.0
        %v834 = vrcp.pop %v833
        %v835 = vmul.f32 1.0, %v834
        %v836 = vlaneseq
        %v837 = vshrl.u32 %v836, 7
        %v838 = vsub.s32 0, %v837
        %v839 = vrot.slane %v835, %v838
        %v840 = vmul.f32 %v720, %v839
        %v841 = vmul.f32 %v723, %v839
        %v842 = vpack.c.bf16 %v841, %v840
        %v843 = vld [vmem:[%s1] sm:$0xf]
        %v845 = vsel %vm656, %v843, 0
        %847 = vmatprep.subr.bf16.mxu0 0
        %848 = vmatpush1.bf16.msra.mxu0 %v396
        %849 = vmatprep.subr.bf16.mxu0 0
        %850 = vmatpush1.bf16.msra.mxu0 0
        %851 = vmatprep.subr.bf16.mxu0 0
        %852 = vmatpush1.bf16.msra.mxu0 0
        %853 = vmatprep.subr.bf16.mxu0 0
        %854 = vmatpush1.bf16.msra.mxu0 0
        %855 = vmatprep.subr.bf16.mxu0 0
        %856 = vmatpush1.bf16.msra.mxu0 0
        %857 = vmatprep.subr.bf16.mxu0 0
        %858 = vmatpush1.bf16.msra.mxu0 0
        %859 = vmatprep.subr.bf16.mxu0 0
        %860 = vmatpush1.bf16.msra.mxu0 0
        %861 = vmatprep.subr.bf16.mxu0 0
        %862 = vmatpush1.bf16.msra.mxu0 0
        %863 = vmatprep.subr.bf16.mxu0 0
        %864 = vmatpush1.bf16.msra.mxu0 0
        %865 = vmatprep.subr.bf16.mxu0 0
        %866 = vmatpush1.bf16.msra.mxu0 0
        %867 = vmatprep.subr.bf16.mxu0 0
        %868 = vmatpush1.bf16.msra.mxu0 0
        %869 = vmatprep.subr.bf16.mxu0 0
        %870 = vmatpush1.bf16.msra.mxu0 0
        %871 = vmatprep.subr.bf16.mxu0 0
        %872 = vmatpush1.bf16.msra.mxu0 0
        %873 = vmatprep.subr.bf16.mxu0 0
        %874 = vmatpush1.bf16.msra.mxu0 0
        %875 = vmatprep.subr.bf16.mxu0 0
        %876 = vmatpush1.bf16.msra.mxu0 0
        %877 = vmatprep.subr.bf16.mxu0 0
        %878 = vmatpush1.bf16.msra.mxu0 0
        %879 = vmatprep.mubr.bf16.mxu0 0
        %880 = vmatmul.mubr.bf16.gmra.mrb[0].mxu0 %v845
        %v881 = vpop.f32.mrb[0].mxu0
        %v882 = vadd.f32 0.0, %v881
        %v883 = vpop.f32.mrb[0].mxu0
        %v884 = vpop.f32.mrb[0].mxu0
        %v885 = vpop.f32.mrb[0].mxu0
        %886 = vdwg.mxu0
        %v887 = vld [vmem:[%s5] sm:$0xf]
        %v888 = vld [vmem:[%s5 + $0x4] sm:$0xf]
        %v889 = vld [vmem:[%s5 + $0x8] sm:$0xf]
        %v890 = vld [vmem:[%s5 + $0xc] sm:$0xf]
        %v891 = vld [vmem:[%s5 + $0x10] sm:$0xf]
        %v892 = vld [vmem:[%s5 + $0x14] sm:$0xf]
        %v893 = vld [vmem:[%s5 + $0x18] sm:$0xf]
        %v894 = vld [vmem:[%s5 + $0x1c] sm:$0xf]
        %v895 = vld [vmem:[%s5 + $0x20] sm:$0xf]
        %v896 = vld [vmem:[%s5 + $0x24] sm:$0xf]
        %v897 = vld [vmem:[%s5 + $0x28] sm:$0xf]
        %v898 = vld [vmem:[%s5 + $0x2c] sm:$0xf]
        %v899 = vld [vmem:[%s5 + $0x30] sm:$0xf]
        %v900 = vld [vmem:[%s5 + $0x34] sm:$0xf]
        %v901 = vld [vmem:[%s5 + $0x38] sm:$0xf]
        %v902 = vld [vmem:[%s5 + $0x3c] sm:$0xf]
        %v903 = vpack.c.bf16 %v882, %v882
        %v904 = vld [vmem:[%s8 + $0x6] sm:$0x1]
        %v905 = vlaneseq
        %v906 = vshrl.u32 %v905, 7
        %v907 = vsub.s32 0, %v906
        %v908 = vrot.slane %v904, %v907
        %v925 = vunpack.c.l.b16 %v887
        %v926 = vunpack.c.l.b16 %v888
        %v927 = vunpack.c.l.b16 %v889
        %v928 = vunpack.c.l.b16 %v890
        %v929 = vunpack.c.l.b16 %v891
        %v930 = vunpack.c.l.b16 %v892
        %v931 = vunpack.c.l.b16 %v893
        %v932 = vunpack.c.l.b16 %v894
        %v933 = vunpack.c.l.b16 %v895
        %v934 = vunpack.c.l.b16 %v896
        %v935 = vunpack.c.l.b16 %v897
        %v936 = vunpack.c.l.b16 %v898
        %v937 = vunpack.c.l.b16 %v899
        %v938 = vunpack.c.l.b16 %v900
        %v939 = vunpack.c.l.b16 %v901
        %v940 = vunpack.c.l.b16 %v902
        %v941 = vpack.c.b16 %v926, %v925
        %v942 = vpack.c.b16 %v928, %v927
        %v943 = vpack.c.b16 %v930, %v929
        %v944 = vpack.c.b16 %v932, %v931
        %v945 = vpack.c.b16 %v934, %v933
        %v946 = vpack.c.b16 %v936, %v935
        %v947 = vpack.c.b16 %v938, %v937
        %v948 = vpack.c.b16 %v940, %v939
        %957 = vmatprep.subr.bf16.mxu0 0
        %958 = vmatpush1.bf16.msra.mxu0 %v941
        %959 = vmatprep.subr.bf16.mxu0 0
        %960 = vmatpush1.bf16.msra.mxu0 %v942
        %961 = vmatprep.subr.bf16.mxu0 0
        %962 = vmatpush1.bf16.msra.mxu0 %v943
        %963 = vmatprep.subr.bf16.mxu0 0
        %964 = vmatpush1.bf16.msra.mxu0 %v944
        %965 = vmatprep.subr.bf16.mxu0 0
        %966 = vmatpush1.bf16.msra.mxu0 %v945
        %967 = vmatprep.subr.bf16.mxu0 0
        %968 = vmatpush1.bf16.msra.mxu0 %v946
        %969 = vmatprep.subr.bf16.mxu0 0
        %970 = vmatpush1.bf16.msra.mxu0 %v947
        %971 = vmatprep.subr.bf16.mxu0 0
        %972 = vmatpush1.bf16.msra.mxu0 %v948
        %973 = vmatprep.subr.bf16.mxu0 0
        %974 = vmatpush1.bf16.msra.mxu0 0
        %975 = vmatprep.subr.bf16.mxu0 0
        %976 = vmatpush1.bf16.msra.mxu0 0
        %977 = vmatprep.subr.bf16.mxu0 0
        %978 = vmatpush1.bf16.msra.mxu0 0
        %979 = vmatprep.subr.bf16.mxu0 0
        %980 = vmatpush1.bf16.msra.mxu0 0
        %981 = vmatprep.subr.bf16.mxu0 0
        %982 = vmatpush1.bf16.msra.mxu0 0
        %983 = vmatprep.subr.bf16.mxu0 0
        %984 = vmatpush1.bf16.msra.mxu0 0
        %985 = vmatprep.subr.bf16.mxu0 0
        %986 = vmatpush1.bf16.msra.mxu0 0
        %987 = vmatprep.subr.bf16.mxu0 0
        %988 = vmatpush1.bf16.msra.mxu0 0
        %989 = vmatprep.mubr.bf16.mxu0 0
        %990 = vmatmul.mubr.bf16.gmra.mrb[0].mxu0 %v903
        %v991 = vpop.f32.mrb[0].mxu0
        %v992 = vadd.f32 %v908, %v991
        %v993 = vpop.f32.mrb[0].mxu0
        %v994 = vpop.f32.mrb[0].mxu0
        %v995 = vpop.f32.mrb[0].mxu0
        %996 = vdwg.mxu0
        %v997 = vmax.f32 %v992, 0.0
        %v998 = vld [vmem:[%s3] sm:$0xff]
        %v999 = vmul.f32 %v997, %v998
        %v1000 = vrot.slane %v999, 4
        %v1001 = vadd.f32 %v999, %v1000
        %v1002 = vrot.slane %v1001, 2
        %v1003 = vadd.f32 %v1001, %v1002
        %v1004 = vrot.slane %v1003, 1
        %v1005 = vadd.f32 %v1003, %v1004
        %v1006 = vld [vmem:[%s6 + $0x4] sm:$0xf]
        %v1007 = vld [vmem:[%s7 + $0x4] sm:$0xf]
        %v1008 = vld [vmem:[%s8 + $0x2] sm:$0x1]
        %v1009 = vld [vmem:[%s8 + $0x3] sm:$0x1]
        %v1010 = vpack.c.bf16 %v1005, %v1005
        %1011 = vmatprep.subr.bf16.mxu0 0
        %1012 = vmatpush1.bf16.xpose.msra.mxu0 %v1006
        %1013 = vmatprep.subr.bf16.mxu0 0
        %1014 = vmatpush1.bf16.xpose.msra.mxu0 0
        %1015 = vmatprep.subr.bf16.mxu0 0
        %1016 = vmatpush1.bf16.xpose.msra.mxu0 0
        %1017 = vmatprep.subr.bf16.mxu0 0
        %1018 = vmatpush1.bf16.xpose.msra.mxu0 0
        %1019 = vmatprep.subr.bf16.mxu0 0
        %1020 = vmatpush1.bf16.xpose.msra.mxu0 0
        %1021 = vmatprep.subr.bf16.mxu0 0
        %1022 = vmatpush1.bf16.xpose.msra.mxu0 0
        %1023 = vmatprep.subr.bf16.mxu0 0
        %1024 = vmatpush1.bf16.xpose.msra.mxu0 0
        %1025 = vmatprep.subr.bf16.mxu0 0
        %1026 = vmatpush1.bf16.xpose.msra.mxu0 0
        %1027 = vmatprep.subr.bf16.mxu0 0
        %1028 = vmatpush1.bf16.xpose.msra.mxu0 0
        %1029 = vmatprep.subr.bf16.mxu0 0
        %1030 = vmatpush1.bf16.xpose.msra.mxu0 0
        %1031 = vmatprep.subr.bf16.mxu0 0
        %1032 = vmatpush1.bf16.xpose.msra.mxu0 0
        %1033 = vmatprep.subr.bf16.mxu0 0
        %1034 = vmatpush1.bf16.xpose.msra.mxu0 0
        %1035 = vmatprep.subr.bf16.mxu0 0
        %1036 = vmatpush1.bf16.xpose.msra.mxu0 0
        %1037 = vmatprep.subr.bf16.mxu0 0
        %1038 = vmatpush1.bf16.xpose.msra.mxu0 0
        %1039 = vmatprep.subr.bf16.mxu0 0
        %1040 = vmatpush1.bf16.xpose.msra.mxu0 0
        %1041 = vmatprep.subr.bf16.mxu0 0
        %1042 = vmatpush1.bf16.xpose.msra.mxu0 0
        %1043 = vmatprep.mubr.bf16.mxu0 0
        %1044 = vmatmul.mubr.bf16.gmra.mrb[0].mxu0 %v1010
        %v1045 = vpop.f32.mrb[0].mxu0
        %v1046 = vadd.f32 %v1008, %v1045
        %v1047 = vpop.f32.mrb[0].mxu0
        %v1048 = vpop.f32.mrb[0].mxu0
        %v1049 = vpop.f32.mrb[0].mxu0
        %1050 = vdwg.mxu0
        %v1051 = vmax.f32 %v1046, 0.0
        %v1052 = vpack.c.bf16 %v1051, %v1051
        %v1054 = vsel %vm782, %v1052, 0
        %v1057 = vsel %vm786, %v1007, 0
        %1059 = vmatprep.subr.bf16.mxu0 0
        %1060 = vmatpush1.bf16.msra.mxu0 %v1057
        %1061 = vmatprep.subr.bf16.mxu0 0
        %1062 = vmatpush1.bf16.msra.mxu0 0
        %1063 = vmatprep.subr.bf16.mxu0 0
        %1064 = vmatpush1.bf16.msra.mxu0 0
        %1065 = vmatprep.subr.bf16.mxu0 0
        %1066 = vmatpush1.bf16.msra.mxu0 0
        %1067 = vmatprep.subr.bf16.mxu0 0
        %1068 = vmatpush1.bf16.msra.mxu0 0
        %1069 = vmatprep.subr.bf16.mxu0 0
        %1070 = vmatpush1.bf16.msra.mxu0 0
        %1071 = vmatprep.subr.bf16.mxu0 0
        %1072 = vmatpush1.bf16.msra.mxu0 0
        %1073 = vmatprep.subr.bf16.mxu0 0
        %1074 = vmatpush1.bf16.msra.mxu0 0
        %1075 = vmatprep.subr.bf16.mxu0 0
        %1076 = vmatpush1.bf16.msra.mxu0 0
        %1077 = vmatprep.subr.bf16.mxu0 0
        %1078 = vmatpush1.bf16.msra.mxu0 0
        %1079 = vmatprep.subr.bf16.mxu0 0
        %1080 = vmatpush1.bf16.msra.mxu0 0
        %1081 = vmatprep.subr.bf16.mxu0 0
        %1082 = vmatpush1.bf16.msra.mxu0 0
        %1083 = vmatprep.subr.bf16.mxu0 0
        %1084 = vmatpush1.bf16.msra.mxu0 0
        %1085 = vmatprep.subr.bf16.mxu0 0
        %1086 = vmatpush1.bf16.msra.mxu0 0
        %1087 = vmatprep.subr.bf16.mxu0 0
        %1088 = vmatpush1.bf16.msra.mxu0 0
        %1089 = vmatprep.subr.bf16.mxu0 0
        %1090 = vmatpush1.bf16.msra.mxu0 0
        %1091 = vmatprep.mubr.bf16.mxu0 0
        %1092 = vmatmul.mubr.bf16.gmra.mrb[0].mxu0 %v1054
        %v1093 = vpop.f32.mrb[0].mxu0
        %v1094 = vadd.f32 %v1009, %v1093
        %v1095 = vpop.f32.mrb[0].mxu0
        %v1096 = vpop.f32.mrb[0].mxu0
        %v1097 = vpop.f32.mrb[0].mxu0
        %1098 = vdwg.mxu0
        %v1099 = vxor.u32 %v1094, 2147483648
        %v1100 = vmul.f32 %v1099, 1.442695
        %v1101 = vpow.pop %v1100
        %v1102 = vadd.f32 %v1101, 1.0
        %v1103 = vrcp.pop %v1102
        %v1104 = vmul.f32 1.0, %v1103
        %v1105 = vlaneseq
        %v1106 = vshrl.u32 %v1105, 7
        %v1107 = vsub.s32 0, %v1106
        %v1108 = vrot.slane %v1104, %v1107
        %v1109 = vmul.f32 %v997, %v1108
        %v1110 = vpack.c.bf16 %v1109, %v1109
        %s1111 = scalar_lea.vmem %s5, 64
        %v1112 = vld [vmem:[%s1111] sm:$0xf]
        %v1113 = vld [vmem:[%s1111 + $0x4] sm:$0xf]
        %v1114 = vld [vmem:[%s1111 + $0x8] sm:$0xf]
        %v1115 = vld [vmem:[%s1111 + $0xc] sm:$0xf]
        %v1116 = vld [vmem:[%s1111 + $0x10] sm:$0xf]
        %v1117 = vld [vmem:[%s1111 + $0x14] sm:$0xf]
        %v1118 = vld [vmem:[%s1111 + $0x18] sm:$0xf]
        %v1119 = vld [vmem:[%s1111 + $0x1c] sm:$0xf]
        %v1120 = vld [vmem:[%s1111 + $0x20] sm:$0xf]
        %v1121 = vld [vmem:[%s1111 + $0x24] sm:$0xf]
        %v1122 = vld [vmem:[%s1111 + $0x28] sm:$0xf]
        %v1123 = vld [vmem:[%s1111 + $0x2c] sm:$0xf]
        %v1124 = vld [vmem:[%s1111 + $0x30] sm:$0xf]
        %v1125 = vld [vmem:[%s1111 + $0x34] sm:$0xf]
        %v1126 = vld [vmem:[%s1111 + $0x38] sm:$0xf]
        %v1127 = vld [vmem:[%s1111 + $0x3c] sm:$0xf]
        %s1128 = scalar_lea.vmem %s5, 128
        %v1129 = vld [vmem:[%s1128] sm:$0xf]
        %v1130 = vld [vmem:[%s1128 + $0x4] sm:$0xf]
        %v1131 = vld [vmem:[%s1128 + $0x8] sm:$0xf]
        %v1132 = vld [vmem:[%s1128 + $0xc] sm:$0xf]
        %v1133 = vld [vmem:[%s1128 + $0x10] sm:$0xf]
        %v1134 = vld [vmem:[%s1128 + $0x14] sm:$0xf]
        %v1135 = vld [vmem:[%s1128 + $0x18] sm:$0xf]
        %v1136 = vld [vmem:[%s1128 + $0x1c] sm:$0xf]
        %v1137 = vld [vmem:[%s1128 + $0x20] sm:$0xf]
        %v1138 = vld [vmem:[%s1128 + $0x24] sm:$0xf]
        %v1139 = vld [vmem:[%s1128 + $0x28] sm:$0xf]
        %v1140 = vld [vmem:[%s1128 + $0x2c] sm:$0xf]
        %v1141 = vld [vmem:[%s1128 + $0x30] sm:$0xf]
        %v1142 = vld [vmem:[%s1128 + $0x34] sm:$0xf]
        %v1143 = vld [vmem:[%s1128 + $0x38] sm:$0xf]
        %v1144 = vld [vmem:[%s1128 + $0x3c] sm:$0xf]
        %v1161 = vunpack.c.l.b16 %v1129
        %v1162 = vunpack.c.l.b16 %v1130
        %v1163 = vunpack.c.l.b16 %v1131
        %v1164 = vunpack.c.l.b16 %v1132
        %v1165 = vunpack.c.l.b16 %v1133
        %v1166 = vunpack.c.l.b16 %v1134
        %v1167 = vunpack.c.l.b16 %v1135
        %v1168 = vunpack.c.l.b16 %v1136
        %v1169 = vunpack.c.l.b16 %v1137
        %v1170 = vunpack.c.l.b16 %v1138
        %v1171 = vunpack.c.l.b16 %v1139
        %v1172 = vunpack.c.l.b16 %v1140
        %v1173 = vunpack.c.l.b16 %v1141
        %v1174 = vunpack.c.l.b16 %v1142
        %v1175 = vunpack.c.l.b16 %v1143
        %v1176 = vunpack.c.l.b16 %v1144
        %v1177 = vpack.c.b16 %v1162, %v1161
        %v1178 = vpack.c.b16 %v1164, %v1163
        %v1179 = vpack.c.b16 %v1166, %v1165
        %v1180 = vpack.c.b16 %v1168, %v1167
        %v1181 = vpack.c.b16 %v1170, %v1169
        %v1182 = vpack.c.b16 %v1172, %v1171
        %v1183 = vpack.c.b16 %v1174, %v1173
        %v1184 = vpack.c.b16 %v1176, %v1175
        %1193 = vmatprep.subr.bf16.mxu0 0
        %1194 = vmatpush1.bf16.msra.mxu0 %v1177
        %1195 = vmatprep.subr.bf16.mxu0 0
        %1196 = vmatpush1.bf16.msra.mxu0 %v1178
        %1197 = vmatprep.subr.bf16.mxu0 0
        %1198 = vmatpush1.bf16.msra.mxu0 %v1179
        %1199 = vmatprep.subr.bf16.mxu0 0
        %1200 = vmatpush1.bf16.msra.mxu0 %v1180
        %1201 = vmatprep.subr.bf16.mxu0 0
        %1202 = vmatpush1.bf16.msra.mxu0 %v1181
        %1203 = vmatprep.subr.bf16.mxu0 0
        %1204 = vmatpush1.bf16.msra.mxu0 %v1182
        %1205 = vmatprep.subr.bf16.mxu0 0
        %1206 = vmatpush1.bf16.msra.mxu0 %v1183
        %1207 = vmatprep.subr.bf16.mxu0 0
        %1208 = vmatpush1.bf16.msra.mxu0 %v1184
        %1209 = vmatprep.subr.bf16.mxu0 0
        %1210 = vmatpush1.bf16.msra.mxu0 0
        %1211 = vmatprep.subr.bf16.mxu0 0
        %1212 = vmatpush1.bf16.msra.mxu0 0
        %1213 = vmatprep.subr.bf16.mxu0 0
        %1214 = vmatpush1.bf16.msra.mxu0 0
        %1215 = vmatprep.subr.bf16.mxu0 0
        %1216 = vmatpush1.bf16.msra.mxu0 0
        %1217 = vmatprep.subr.bf16.mxu0 0
        %1218 = vmatpush1.bf16.msra.mxu0 0
        %1219 = vmatprep.subr.bf16.mxu0 0
        %1220 = vmatpush1.bf16.msra.mxu0 0
        %1221 = vmatprep.subr.bf16.mxu0 0
        %1222 = vmatpush1.bf16.msra.mxu0 0
        %1223 = vmatprep.subr.bf16.mxu0 0
        %1224 = vmatpush1.bf16.msra.mxu0 0
        %1225 = vmatprep.mubr.bf16.mxu0 0
        %1226 = vmatmul.mubr.bf16.gmra.mrb[0].mxu0 %v1110
        %v1227 = vpop.f32.mrb[0].mxu0
        %v1228 = vadd.f32 0.0, %v1227
        %v1229 = vpop.f32.mrb[0].mxu0
        %v1230 = vpop.f32.mrb[0].mxu0
        %v1231 = vpop.f32.mrb[0].mxu0
        %1232 = vdwg.mxu0
        %v1233 = vld [vmem:[%s2] sm:$0xf]
        %v1234 = vld [vmem:[%s2 + $0x4] sm:$0xf]
        %v1235 = vpack.c.bf16 %v1228, %v1228
        %v1238 = vunpack.c.l.b16 %v1233
        %v1239 = vunpack.c.l.b16 %v1234
        %v1240 = vpack.c.b16 %v1239, %v1238
        %v1242 = vsel %vm782, %v1240, 0
        %v1245 = vsel %vm786, %v1235, 0
        %1247 = vmatprep.subr.bf16.mxu0 0
        %1248 = vmatpush1.bf16.msra.mxu0 %v1245
        %1249 = vmatprep.subr.bf16.mxu0 0
        %1250 = vmatpush1.bf16.msra.mxu0 0
        %1251 = vmatprep.subr.bf16.mxu0 0
        %1252 = vmatpush1.bf16.msra.mxu0 0
        %1253 = vmatprep.subr.bf16.mxu0 0
        %1254 = vmatpush1.bf16.msra.mxu0 0
        %1255 = vmatprep.subr.bf16.mxu0 0
        %1256 = vmatpush1.bf16.msra.mxu0 0
        %1257 = vmatprep.subr.bf16.mxu0 0
        %1258 = vmatpush1.bf16.msra.mxu0 0
        %1259 = vmatprep.subr.bf16.mxu0 0
        %1260 = vmatpush1.bf16.msra.mxu0 0
        %1261 = vmatprep.subr.bf16.mxu0 0
        %1262 = vmatpush1.bf16.msra.mxu0 0
        %1263 = vmatprep.subr.bf16.mxu0 0
        %1264 = vmatpush1.bf16.msra.mxu0 0
        %1265 = vmatprep.subr.bf16.mxu0 0
        %1266 = vmatpush1.bf16.msra.mxu0 0
        %1267 = vmatprep.subr.bf16.mxu0 0
        %1268 = vmatpush1.bf16.msra.mxu0 0
        %1269 = vmatprep.subr.bf16.mxu0 0
        %1270 = vmatpush1.bf16.msra.mxu0 0
        %1271 = vmatprep.subr.bf16.mxu0 0
        %1272 = vmatpush1.bf16.msra.mxu0 0
        %1273 = vmatprep.subr.bf16.mxu0 0
        %1274 = vmatpush1.bf16.msra.mxu0 0
        %1275 = vmatprep.subr.bf16.mxu0 0
        %1276 = vmatpush1.bf16.msra.mxu0 0
        %1277 = vmatprep.subr.bf16.mxu0 0
        %1278 = vmatpush1.bf16.msra.mxu0 0
        %1279 = vmatprep.mubr.bf16.mxu0 0
        %1280 = vmatmul.mubr.bf16.gmra.mrb[0].mxu0 %v1242
        %v1281 = vpop.f32.mrb[0].mxu0
        %v1282 = vadd.f32 0.0, %v1281
        %v1283 = vpop.f32.mrb[0].mxu0
        %v1284 = vpop.f32.mrb[0].mxu0
        %v1285 = vadd.f32 0.0, %v1284
        %v1286 = vpop.f32.mrb[0].mxu0
        %1287 = vdwg.mxu0
        %v1304 = vunpack.c.l.b16 %v1112
        %v1305 = vunpack.c.l.b16 %v1113
        %v1306 = vunpack.c.l.b16 %v1114
        %v1307 = vunpack.c.l.b16 %v1115
        %v1308 = vunpack.c.l.b16 %v1116
        %v1309 = vunpack.c.l.b16 %v1117
        %v1310 = vunpack.c.l.b16 %v1118
        %v1311 = vunpack.c.l.b16 %v1119
        %v1312 = vunpack.c.l.b16 %v1120
        %v1313 = vunpack.c.l.b16 %v1121
        %v1314 = vunpack.c.l.b16 %v1122
        %v1315 = vunpack.c.l.b16 %v1123
        %v1316 = vunpack.c.l.b16 %v1124
        %v1317 = vunpack.c.l.b16 %v1125
        %v1318 = vunpack.c.l.b16 %v1126
        %v1319 = vunpack.c.l.b16 %v1127
        %v1320 = vpack.c.b16 %v1305, %v1304
        %v1321 = vpack.c.b16 %v1307, %v1306
        %v1322 = vpack.c.b16 %v1309, %v1308
        %v1323 = vpack.c.b16 %v1311, %v1310
        %v1324 = vpack.c.b16 %v1313, %v1312
        %v1325 = vpack.c.b16 %v1315, %v1314
        %v1326 = vpack.c.b16 %v1317, %v1316
        %v1327 = vpack.c.b16 %v1319, %v1318
        %1336 = vmatprep.subr.bf16.mxu0 0
        %1337 = vmatpush1.bf16.msra.mxu0 %v1320
        %1338 = vmatprep.subr.bf16.mxu0 0
        %1339 = vmatpush1.bf16.msra.mxu0 %v1321
        %1340 = vmatprep.subr.bf16.mxu0 0
        %1341 = vmatpush1.bf16.msra.mxu0 %v1322
        %1342 = vmatprep.subr.bf16.mxu0 0
        %1343 = vmatpush1.bf16.msra.mxu0 %v1323
        %1344 = vmatprep.subr.bf16.mxu0 0
        %1345 = vmatpush1.bf16.msra.mxu0 %v1324
        %1346 = vmatprep.subr.bf16.mxu0 0
        %1347 = vmatpush1.bf16.msra.mxu0 %v1325
        %1348 = vmatprep.subr.bf16.mxu0 0
        %1349 = vmatpush1.bf16.msra.mxu0 %v1326
        %1350 = vmatprep.subr.bf16.mxu0 0
        %1351 = vmatpush1.bf16.msra.mxu0 %v1327
        %1352 = vmatprep.subr.bf16.mxu0 0
        %1353 = vmatpush1.bf16.msra.mxu0 0
        %1354 = vmatprep.subr.bf16.mxu0 0
        %1355 = vmatpush1.bf16.msra.mxu0 0
        %1356 = vmatprep.subr.bf16.mxu0 0
        %1357 = vmatpush1.bf16.msra.mxu0 0
        %1358 = vmatprep.subr.bf16.mxu0 0
        %1359 = vmatpush1.bf16.msra.mxu0 0
        %1360 = vmatprep.subr.bf16.mxu0 0
        %1361 = vmatpush1.bf16.msra.mxu0 0
        %1362 = vmatprep.subr.bf16.mxu0 0
        %1363 = vmatpush1.bf16.msra.mxu0 0
        %1364 = vmatprep.subr.bf16.mxu0 0
        %1365 = vmatpush1.bf16.msra.mxu0 0
        %1366 = vmatprep.subr.bf16.mxu0 0
        %1367 = vmatpush1.bf16.msra.mxu0 0
        %1368 = vmatprep.mubr.bf16.mxu0 0
        %1369 = vmatmul.mubr.bf16.gmra.mrb[0].mxu0 %v842
        %v1370 = vpop.f32.mrb[0].mxu0
        %v1371 = vadd.f32 0.0, %v1370
        %v1372 = vpop.f32.mrb[0].mxu0
        %v1373 = vpop.f32.mrb[0].mxu0
        %v1374 = vadd.f32 0.0, %v1373
        %v1375 = vpop.f32.mrb[0].mxu0
        %1376 = vdwg.mxu0
        %v1377 = vadd.f32 %v1371, %v1282
        %v1378 = vadd.f32 %v1374, %v1285
        %v1379 = vld [vmem:[%s8 + $0x7] sm:$0x1]
        %v1380 = vlaneseq
        %v1381 = vshrl.u32 %v1380, 7
        %v1382 = vsub.s32 0, %v1381
        %v1383 = vrot.slane %v1379, %v1382
        %v1384 = vadd.f32 %v1377, %v1383
        %v1385 = vadd.f32 %v1378, %v1383
        %v1386 = vmax.f32 %v1384, 0.0
        %v1387 = vmax.f32 %v1385, 0.0
        %v1388 = vadd.f32 %v1386, %v1387
        %v1389 = vrot.slane %v1388, 4
        %v1390 = vadd.f32 %v1388, %v1389
        %v1391 = vrot.slane %v1390, 2
        %v1392 = vadd.f32 %v1390, %v1391
        %v1393 = vrot.slane %v1392, 1
        %v1394 = vadd.f32 %v1392, %v1393
        %v1395 = vmul.f32 %v1394, %v733
        %v1396 = vld [vmem:[%s6 + $0x8] sm:$0xf]
        %v1397 = vld [vmem:[%s7 + $0x8] sm:$0xf]
        %v1398 = vld [vmem:[%s8 + $0x4] sm:$0x1]
        %v1399 = vld [vmem:[%s8 + $0x5] sm:$0x1]
        %v1400 = vpack.c.bf16 %v1395, %v1395
        %1401 = vmatprep.subr.bf16.mxu0 0
        %1402 = vmatpush1.bf16.xpose.msra.mxu0 %v1396
        %1403 = vmatprep.subr.bf16.mxu0 0
        %1404 = vmatpush1.bf16.xpose.msra.mxu0 0
        %1405 = vmatprep.subr.bf16.mxu0 0
        %1406 = vmatpush1.bf16.xpose.msra.mxu0 0
        %1407 = vmatprep.subr.bf16.mxu0 0
        %1408 = vmatpush1.bf16.xpose.msra.mxu0 0
        %1409 = vmatprep.subr.bf16.mxu0 0
        %1410 = vmatpush1.bf16.xpose.msra.mxu0 0
        %1411 = vmatprep.subr.bf16.mxu0 0
        %1412 = vmatpush1.bf16.xpose.msra.mxu0 0
        %1413 = vmatprep.subr.bf16.mxu0 0
        %1414 = vmatpush1.bf16.xpose.msra.mxu0 0
        %1415 = vmatprep.subr.bf16.mxu0 0
        %1416 = vmatpush1.bf16.xpose.msra.mxu0 0
        %1417 = vmatprep.subr.bf16.mxu0 0
        %1418 = vmatpush1.bf16.xpose.msra.mxu0 0
        %1419 = vmatprep.subr.bf16.mxu0 0
        %1420 = vmatpush1.bf16.xpose.msra.mxu0 0
        %1421 = vmatprep.subr.bf16.mxu0 0
        %1422 = vmatpush1.bf16.xpose.msra.mxu0 0
        %1423 = vmatprep.subr.bf16.mxu0 0
        %1424 = vmatpush1.bf16.xpose.msra.mxu0 0
        %1425 = vmatprep.subr.bf16.mxu0 0
        %1426 = vmatpush1.bf16.xpose.msra.mxu0 0
        %1427 = vmatprep.subr.bf16.mxu0 0
        %1428 = vmatpush1.bf16.xpose.msra.mxu0 0
        %1429 = vmatprep.subr.bf16.mxu0 0
        %1430 = vmatpush1.bf16.xpose.msra.mxu0 0
        %1431 = vmatprep.subr.bf16.mxu0 0
        %1432 = vmatpush1.bf16.xpose.msra.mxu0 0
        %1433 = vmatprep.mubr.bf16.mxu0 0
        %1434 = vmatmul.mubr.bf16.gmra.mrb[0].mxu0 %v1400
        %v1435 = vpop.f32.mrb[0].mxu0
        %v1436 = vadd.f32 %v1398, %v1435
        %v1437 = vpop.f32.mrb[0].mxu0
        %v1438 = vpop.f32.mrb[0].mxu0
        %v1439 = vpop.f32.mrb[0].mxu0
        %1440 = vdwg.mxu0
        %v1441 = vmax.f32 %v1436, 0.0
        %v1442 = vpack.c.bf16 %v1441, %v1441
        %v1444 = vsel %vm782, %v1442, 0
        %v1447 = vsel %vm786, %v1397, 0
        %1449 = vmatprep.subr.bf16.mxu0 0
        %1450 = vmatpush1.bf16.msra.mxu0 %v1447
        %1451 = vmatprep.subr.bf16.mxu0 0
        %1452 = vmatpush1.bf16.msra.mxu0 0
        %1453 = vmatprep.subr.bf16.mxu0 0
        %1454 = vmatpush1.bf16.msra.mxu0 0
        %1455 = vmatprep.subr.bf16.mxu0 0
        %1456 = vmatpush1.bf16.msra.mxu0 0
        %1457 = vmatprep.subr.bf16.mxu0 0
        %1458 = vmatpush1.bf16.msra.mxu0 0
        %1459 = vmatprep.subr.bf16.mxu0 0
        %1460 = vmatpush1.bf16.msra.mxu0 0
        %1461 = vmatprep.subr.bf16.mxu0 0
        %1462 = vmatpush1.bf16.msra.mxu0 0
        %1463 = vmatprep.subr.bf16.mxu0 0
        %1464 = vmatpush1.bf16.msra.mxu0 0
        %1465 = vmatprep.subr.bf16.mxu0 0
        %1466 = vmatpush1.bf16.msra.mxu0 0
        %1467 = vmatprep.subr.bf16.mxu0 0
        %1468 = vmatpush1.bf16.msra.mxu0 0
        %1469 = vmatprep.subr.bf16.mxu0 0
        %1470 = vmatpush1.bf16.msra.mxu0 0
        %1471 = vmatprep.subr.bf16.mxu0 0
        %1472 = vmatpush1.bf16.msra.mxu0 0
        %1473 = vmatprep.subr.bf16.mxu0 0
        %1474 = vmatpush1.bf16.msra.mxu0 0
        %1475 = vmatprep.subr.bf16.mxu0 0
        %1476 = vmatpush1.bf16.msra.mxu0 0
        %1477 = vmatprep.subr.bf16.mxu0 0
        %1478 = vmatpush1.bf16.msra.mxu0 0
        %1479 = vmatprep.subr.bf16.mxu0 0
        %1480 = vmatpush1.bf16.msra.mxu0 0
        %1481 = vmatprep.mubr.bf16.mxu0 0
        %1482 = vmatmul.mubr.bf16.gmra.mrb[0].mxu0 %v1444
        %v1483 = vpop.f32.mrb[0].mxu0
        %v1484 = vadd.f32 %v1399, %v1483
        %v1485 = vpop.f32.mrb[0].mxu0
        %v1486 = vpop.f32.mrb[0].mxu0
        %v1487 = vpop.f32.mrb[0].mxu0
        %1488 = vdwg.mxu0
        %v1489 = vxor.u32 %v1484, 2147483648
        %v1490 = vmul.f32 %v1489, 1.442695
        %v1491 = vpow.pop %v1490
        %v1492 = vadd.f32 %v1491, 1.0
        %v1493 = vrcp.pop %v1492
        %v1494 = vmul.f32 1.0, %v1493
        %v1495 = vmul.f32 %v1395, %v1494
        %v1496 = vpack.c.bf16 %v1495, %v1495
        %v1497 = vld [vmem:[%s9] sm:$0xf]
        %v1498 = vld [vmem:[%s9 + $0x4] sm:$0xf]
        %v1499 = vld [vmem:[%s9 + $0x8] sm:$0xf]
        %v1500 = vld [vmem:[%s9 + $0xc] sm:$0xf]
        %v1501 = vld [vmem:[%s9 + $0x10] sm:$0xf]
        %v1502 = vld [vmem:[%s9 + $0x14] sm:$0xf]
        %v1503 = vld [vmem:[%s9 + $0x18] sm:$0xf]
        %v1504 = vld [vmem:[%s9 + $0x1c] sm:$0xf]
        %v1505 = vld [vmem:[%s9 + $0x20] sm:$0xf]
        %v1506 = vld [vmem:[%s9 + $0x24] sm:$0xf]
        %v1507 = vld [vmem:[%s9 + $0x28] sm:$0xf]
        %v1508 = vld [vmem:[%s9 + $0x2c] sm:$0xf]
        %v1509 = vld [vmem:[%s9 + $0x30] sm:$0xf]
        %v1510 = vld [vmem:[%s9 + $0x34] sm:$0xf]
        %v1511 = vld [vmem:[%s9 + $0x38] sm:$0xf]
        %v1512 = vld [vmem:[%s9 + $0x3c] sm:$0xf]
        %v1513 = vld [vmem:[%s8 + $0x8] sm:$0x1]
        %v1530 = vunpack.c.l.b16 %v1497
        %v1531 = vunpack.c.l.b16 %v1498
        %v1532 = vunpack.c.l.b16 %v1499
        %v1533 = vunpack.c.l.b16 %v1500
        %v1534 = vunpack.c.l.b16 %v1501
        %v1535 = vunpack.c.l.b16 %v1502
        %v1536 = vunpack.c.l.b16 %v1503
        %v1537 = vunpack.c.l.b16 %v1504
        %v1538 = vunpack.c.l.b16 %v1505
        %v1539 = vunpack.c.l.b16 %v1506
        %v1540 = vunpack.c.l.b16 %v1507
        %v1541 = vunpack.c.l.b16 %v1508
        %v1542 = vunpack.c.l.b16 %v1509
        %v1543 = vunpack.c.l.b16 %v1510
        %v1544 = vunpack.c.l.b16 %v1511
        %v1545 = vunpack.c.l.b16 %v1512
        %v1546 = vpack.c.b16 %v1531, %v1530
        %v1547 = vpack.c.b16 %v1533, %v1532
        %v1548 = vpack.c.b16 %v1535, %v1534
        %v1549 = vpack.c.b16 %v1537, %v1536
        %v1550 = vpack.c.b16 %v1539, %v1538
        %v1551 = vpack.c.b16 %v1541, %v1540
        %v1552 = vpack.c.b16 %v1543, %v1542
        %v1553 = vpack.c.b16 %v1545, %v1544
        %1562 = vmatprep.subr.bf16.mxu0 0
        %1563 = vmatpush1.bf16.msra.mxu0 %v1546
        %1564 = vmatprep.subr.bf16.mxu0 0
        %1565 = vmatpush1.bf16.msra.mxu0 %v1547
        %1566 = vmatprep.subr.bf16.mxu0 0
        %1567 = vmatpush1.bf16.msra.mxu0 %v1548
        %1568 = vmatprep.subr.bf16.mxu0 0
        %1569 = vmatpush1.bf16.msra.mxu0 %v1549
        %1570 = vmatprep.subr.bf16.mxu0 0
        %1571 = vmatpush1.bf16.msra.mxu0 %v1550
        %1572 = vmatprep.subr.bf16.mxu0 0
        %1573 = vmatpush1.bf16.msra.mxu0 %v1551
        %1574 = vmatprep.subr.bf16.mxu0 0
        %1575 = vmatpush1.bf16.msra.mxu0 %v1552
        %1576 = vmatprep.subr.bf16.mxu0 0
        %1577 = vmatpush1.bf16.msra.mxu0 %v1553
        %1578 = vmatprep.subr.bf16.mxu0 0
        %1579 = vmatpush1.bf16.msra.mxu0 0
        %1580 = vmatprep.subr.bf16.mxu0 0
        %1581 = vmatpush1.bf16.msra.mxu0 0
        %1582 = vmatprep.subr.bf16.mxu0 0
        %1583 = vmatpush1.bf16.msra.mxu0 0
        %1584 = vmatprep.subr.bf16.mxu0 0
        %1585 = vmatpush1.bf16.msra.mxu0 0
        %1586 = vmatprep.subr.bf16.mxu0 0
        %1587 = vmatpush1.bf16.msra.mxu0 0
        %1588 = vmatprep.subr.bf16.mxu0 0
        %1589 = vmatpush1.bf16.msra.mxu0 0
        %1590 = vmatprep.subr.bf16.mxu0 0
        %1591 = vmatpush1.bf16.msra.mxu0 0
        %1592 = vmatprep.subr.bf16.mxu0 0
        %1593 = vmatpush1.bf16.msra.mxu0 0
        %1594 = vmatprep.mubr.bf16.mxu0 0
        %1595 = vmatmul.mubr.bf16.gmra.mrb[0].mxu0 %v1496
        %v1596 = vpop.f32.mrb[0].mxu0
        %v1597 = vadd.f32 %v1513, %v1596
        %v1598 = vpop.f32.mrb[0].mxu0
        %v1599 = vpop.f32.mrb[0].mxu0
        %v1600 = vpop.f32.mrb[0].mxu0
        %1601 = vdwg.mxu0
        %vm1602 = vcmask 49152
        %1603 = vst.msk [vmem:[%s351] sm:$0x1] %vm1602, %v1597
        %s1604 = sand.u32 %s247, 1
        %s1605 = scalar_lea.sflag [#allocation3], %s1604
        %s1606 = sand.u32 %s247, 1
        %s1607 = scalar_lea.vmem [#allocation2], %s1606
        // Predicated region
        $region61: #{forward.3} parent=59 // pred_check
          %p1608 = pneg %p257
        $region62: #{forward.3} parent=59 // pred_check_branch
          %1610 = sbr.rel (%p1608) target = $region64
        $region63: #{forward.3} parent=59 // pred_region
          %s1612 = ssub.s32 16, 16
          %1613 = vsyncadd %s1605, %s1612
          %s1614 = smul.addr %s24, 16
          %s1615 = scalar_lea.hbm %s10, %s1614
          %s1617 = sshll.u32 %s1607, 4
          %s1618 = int_to_ptr.vmem [resolvable:$true] %s1617
          %1620 = dma.vmem_to_hbm [thread:$0]  %s1618, 16, %s1615, %s1605
        $region64: #{forward.3} parent=59 // pred_fallthru
          _
      $region60: #{forward.3} parent=5 // pred_fallthru
        _
      %p1621 = scmp.le.s32.totalorder 2, %s19
      // Predicated region
      $region65: #{forward.3} parent=5 // pred_check
        %p1622 = pneg %p1621
      $region66: #{forward.3} parent=5 // pred_check_branch
        %1624 = sbr.rel (%p1622) target = $region68
      $region67: #{forward.3} parent=5 // pred_region
        %s1625 = ssub.s32 %s19, 2
        // Predicated region
        $region69: #{forward.3} parent=67 // pred_check
          %p1626 = pneg %p263
        $region70: #{forward.3} parent=67 // pred_check_branch
          %1628 = sbr.rel (%p1626) target = $region72
        $region71: #{forward.3} parent=67 // pred_region
          %s1629 = sand.u32 %s248, 1
          %s1630 = scalar_lea.sflag [#allocation3], %s1629
          %s1631 = sand.u32 %s248, 1
          %s1632 = scalar_lea.vmem [#allocation2], %s1631
          %1633 = dma.done %s1630, 16
        $region72: #{forward.3} parent=67 // pred_fallthru
          _
      $region68: #{forward.3} parent=5 // pred_fallthru
        _
    $region6: #{forward.3} parent=1 // loop_footer
      %s23 = sadd.s32 1, %s19
    $region7: #{forward.3} parent=1 // loop_footer_branch
      %18 = sbr.rel target = $region3
    $region8: #{forward.3} parent=1 // loop_exit
      _
    %1634 = vsyncpa [#allocation3], 1
    %s1635 = scalar_lea.sflag [#allocation3], 1
    %1636 = vsyncpa %s1635, 1

</llo_original>
